<compile_context>
chip_gen: v7x
topology: tpu7x:2x2x1
jax: 0.10.0
libtpu: 0.0.40
codegen_flags: <defaults>
</compile_context>

<pallas_src>
import numpy as np
import jax
import jax.numpy as jnp
from jax.experimental import pallas as pl
from jax.experimental.pallas import tpu as pltpu


def _round_up(x, m):
    return (x + m - 1) // m * m


def lstm_kernel(x_ref, wih_ref, whh_ref, b_ref, fcw_ref, fcb_ref, out_ref):
    """Full LSTM recurrence + final Linear in one grid-less kernel invocation.

    x_ref:   (T, Bp, 1)   time-major input, batch zero-padded to Bp (f32)
    wih_ref: (1, 4*Hp)    input->gate weights (I == 1), i/f/o slabs pre-scaled by 0.5 (f32)
    whh_ref: (Hp, 4*Hp)   fused hidden->gate weights, i/f/o slabs pre-scaled by 0.5 (bf16)
    b_ref:   (1, 4*Hp)    combined bias (b_ih + b_hh), i/f/o slabs pre-scaled by 0.5 (f32)
    fcw_ref: (1, Hp)      final Linear weight row (O == 1), zero-padded (f32)
    fcb_ref: (1, 128)     final Linear bias broadcast across lanes (f32)
    out_ref: (Bp, 128)    lane-dense output tile; column 0 is the real result
    """
    T, Bp, _ = x_ref.shape
    Hp = whh_ref.shape[0]

    h = jnp.zeros((Bp, Hp), jnp.float32)
    c = jnp.zeros((Bp, Hp), jnp.float32)

    # Fully unrolled static chain: one fused bf16 MXU matmul per step, a single tanh over
    # the whole gates tile, static 128-aligned lane slices, state carried in vregs.
    for t in range(T):
        # Input projection (I == 1): lane-broadcast multiply, independent of h, so it
        # schedules off the recurrent critical path.  Bias is already folded in.
        xw = x_ref[t] * wih_ref[...] + b_ref[...]                       # (Bp, 4*Hp) f32

        gates = xw + jnp.dot(h.astype(jnp.bfloat16), whh_ref[...],
                             preferred_element_type=jnp.float32)        # (Bp, 4*Hp) f32

        # One EUP tanh for all four gate slabs.  i/f/o pre-activations were pre-scaled by
        # 0.5, so sigmoid(z) = 0.5 * tanh(z/2) + 0.5 = 0.5 * t_slab + 0.5; g is plain tanh.
        tg = jnp.tanh(gates)
        i_g = 0.5 * tg[:, 0 * Hp:1 * Hp] + 0.5
        f_g = 0.5 * tg[:, 1 * Hp:2 * Hp] + 0.5
        g_g = tg[:, 2 * Hp:3 * Hp]
        o_g = 0.5 * tg[:, 3 * Hp:4 * Hp] + 0.5

        c = f_g * c + i_g * g_g
        h = o_g * jnp.tanh(c)

    # fc(out[:, -1, :]) with O == 1: VPU multiply + XLU lane reduction (no MXU, no 64 KiB
    # weight DMA).  Broadcast the single column across all 128 lanes for an unmasked store.
    out_col = jnp.sum(h * fcw_ref[...], axis=-1, keepdims=True)         # (Bp, 1)
    out_ref[...] = (jnp.broadcast_to(out_col, out_ref.shape)
                    + fcb_ref[...]).astype(out_ref.dtype)


def lstm_model_forward(x, params, output_size):
    """x: (B, T, I) float32 (PyTorch batch_first layout). Returns (B, output_size)."""
    wih, whh, bias, fcw, fcb = params
    B, T, I = x.shape
    assert I == 1, "kernel specializes the I == 1 input projection"
    assert output_size == 1, "kernel specializes the O == 1 output reduction"
    Bp = _round_up(max(B, 8), 8)

    x_tm = jnp.transpose(x, (1, 0, 2))                                  # (T, B, 1) time-major
    x_pad = jnp.zeros((T, Bp, 1), jnp.float32).at[:, :B, :].set(x_tm)

    vmem = pl.BlockSpec(memory_space=pltpu.MemorySpace.VMEM)
    out_pad = pl.pallas_call(
        lstm_kernel,
        out_shape=jax.ShapeDtypeStruct((Bp, 128), jnp.float32),
        in_specs=[vmem] * 6,
        out_specs=vmem,
    )(x_pad, wih, whh, bias, fcw, fcb)
    return out_pad[:B, :output_size]


def init_params(key, input_size, hidden_size, output_size):
    """PyTorch-style U(-1/sqrt(H), 1/sqrt(H)) init. Returns (packed kernel params, raw)."""
    assert input_size == 1 and output_size == 1
    H, O = hidden_size, output_size
    Hp = _round_up(H, 128)
    k = 1.0 / np.sqrt(H)
    keys = jax.random.split(key, 6)
    w_ih = jax.random.uniform(keys[0], (4 * H, input_size), jnp.float32, -k, k)
    w_hh = jax.random.uniform(keys[1], (4 * H, H), jnp.float32, -k, k)
    b_ih = jax.random.uniform(keys[2], (4 * H,), jnp.float32, -k, k)
    b_hh = jax.random.uniform(keys[3], (4 * H,), jnp.float32, -k, k)
    fc_w = jax.random.uniform(keys[4], (O, H), jnp.float32, -k, k)
    fc_b = jax.random.uniform(keys[5], (O,), jnp.float32, -k, k)

    # Fused, zero-padded kernel layouts.  Gate order (i, f, g, o), one 128-lane slab per
    # gate.  The i/f/o slabs are pre-scaled by 0.5 so the kernel can use the
    # sigmoid(z) = 0.5*tanh(z/2) + 0.5 identity with a single tanh over the gates tile.
    # Zero padding keeps padded hidden lanes exactly zero (given zero initial h/c).
    b_sum = b_ih + b_hh
    gate_scale = (0.5, 0.5, 1.0, 0.5)                                   # (i, f, g, o)

    wih_k = jnp.zeros((1, 4 * Hp), jnp.float32)
    whh_k = jnp.zeros((Hp, 4 * Hp), jnp.float32)
    b_k = jnp.zeros((1, 4 * Hp), jnp.float32)
    for g, s in enumerate(gate_scale):
        wih_k = wih_k.at[0, g * Hp:g * Hp + H].set(s * w_ih[g * H:(g + 1) * H, 0])
        whh_k = whh_k.at[:H, g * Hp:g * Hp + H].set(s * w_hh[g * H:(g + 1) * H, :].T)
        b_k = b_k.at[0, g * Hp:g * Hp + H].set(s * b_sum[g * H:(g + 1) * H])
    whh_k = whh_k.astype(jnp.bfloat16)           # bf16 MXU weights (f32 accumulate)

    fcw_k = jnp.zeros((1, Hp), jnp.float32).at[0, :H].set(fc_w[0, :])
    fcb_k = jnp.full((1, 128), fc_b[0], jnp.float32)

    return (wih_k, whh_k, b_k, fcw_k, fcb_k), (w_ih, w_hh, b_ih, b_hh, fc_w, fc_b)


def reference_forward(x, raw):
    """Pure-JAX f32 reference reproducing torch.nn.LSTM + Linear semantics exactly."""
    w_ih, w_hh, b_ih, b_hh, fc_w, fc_b = raw
    B, T, I = x.shape
    H = w_hh.shape[1]
    h = jnp.zeros((B, H), jnp.float32)
    c = jnp.zeros((B, H), jnp.float32)
    for t in range(T):
        gates = x[:, t, :] @ w_ih.T + h @ w_hh.T + b_ih + b_hh          # (B, 4H)
        i = jax.nn.sigmoid(gates[:, 0 * H:1 * H])
        f = jax.nn.sigmoid(gates[:, 1 * H:2 * H])
        g = jnp.tanh(gates[:, 2 * H:3 * H])
        o = jax.nn.sigmoid(gates[:, 3 * H:4 * H])
        c = f * c + i * g
        h = o * jnp.tanh(c)
    return h @ fc_w.T + fc_b


def kernel_precision_reference(x, params, output_size):
    """Pure-JAX re-implementation of the kernel's exact math (bf16 matmul, tanh form).

    Used to validate the kernel's logic tightly; any difference vs reference_forward is
    the accepted bf16-weight precision trade, not a bug.
    """
    wih, whh, bias, fcw, fcb = params
    B, T, _ = x.shape
    Bp = _round_up(max(B, 8), 8)
    Hp = whh.shape[0]
    x_tm = jnp.transpose(x, (1, 0, 2))
    x_pad = jnp.zeros((T, Bp, 1), jnp.float32).at[:, :B, :].set(x_tm)
    h = jnp.zeros((Bp, Hp), jnp.float32)
    c = jnp.zeros((Bp, Hp), jnp.float32)
    for t in range(T):
        xw = x_pad[t] * wih + bias
        gates = xw + jnp.dot(h.astype(jnp.bfloat16), whh,
                             preferred_element_type=jnp.float32)
        tg = jnp.tanh(gates)
        i_g = 0.5 * tg[:, 0 * Hp:1 * Hp] + 0.5
        f_g = 0.5 * tg[:, 1 * Hp:2 * Hp] + 0.5
        g_g = tg[:, 2 * Hp:3 * Hp]
        o_g = 0.5 * tg[:, 3 * Hp:4 * Hp] + 0.5
        c = f_g * c + i_g * g_g
        h = o_g * jnp.tanh(c)
    out = jnp.sum(h * fcw, axis=-1, keepdims=True) + fcb[0, 0]
    return out[:B, :output_size]


if __name__ == "__main__":
    input_size, hidden_size, output_size = 1, 50, 1
    batch, seq = 2, 8

    key = jax.random.PRNGKey(0)
    k_x, k_p = jax.random.split(key)
    x = jax.random.normal(k_x, (batch, seq, input_size), jnp.float32)

    params, raw = init_params(k_p, input_size, hidden_size, output_size)

    out = lstm_model_forward(x, params, output_size)
    out = jax.block_until_ready(out)

    # Tight check of the kernel's own math (same bf16 matmul / tanh formulation).
    ref_matched = kernel_precision_reference(x, params, output_size)
    np.testing.assert_allclose(np.asarray(out), np.asarray(ref_matched),
                               rtol=1e-4, atol=1e-4)

    # Semantic check vs the exact f32 torch.nn.LSTM + Linear reference; looser tolerance
    # is the accepted bf16-recurrent-weight precision trade (per perf review).
    ref_exact = reference_forward(x, raw)
    np.testing.assert_allclose(np.asarray(out), np.asarray(ref_exact),
                               rtol=2e-2, atol=2e-2)

    print("KERNEL_OK")
</pallas_src>

<mosaic_0001>
module attributes {stable_mosaic.version = 11 : i64} {
  func.func @lstm_kernel(%arg0: memref<8x8x1xf32, #tpu.memory_space<vmem>>, %arg1: memref<1x512xf32, #tpu.memory_space<vmem>>, %arg2: memref<128x512xbf16, #tpu.memory_space<vmem>>, %arg3: memref<1x512xf32, #tpu.memory_space<vmem>>, %arg4: memref<1x128xf32, #tpu.memory_space<vmem>>, %arg5: memref<1x128xf32, #tpu.memory_space<vmem>>, %arg6: memref<8x128xf32, #tpu.memory_space<vmem>>) attributes {dimension_semantics = [], scalar_prefetch = 0 : i64, scratch_operands = 0 : i64, tpu.core_type = #tpu.core_type<tc>} {
    %cst = arith.constant 0.000000e+00 : f32
    %0 = vector.broadcast %cst : f32 to vector<8x128xf32>
    %cst_0 = arith.constant 0.000000e+00 : f32
    %1 = vector.broadcast %cst_0 : f32 to vector<8x128xf32>
    %c0 = arith.constant 0 : index
    %c0_1 = arith.constant 0 : index
    %c0_2 = arith.constant 0 : index
    %2 = vector.load %arg0[%c0, %c0_1, %c0_2] : memref<8x8x1xf32, #tpu.memory_space<vmem>>, vector<1x8x1xf32>
    %3 = vector.shape_cast %2 : vector<1x8x1xf32> to vector<8x1xf32>
    %c0_3 = arith.constant 0 : index
    %c0_4 = arith.constant 0 : index
    %4 = vector.load %arg1[%c0_3, %c0_4] : memref<1x512xf32, #tpu.memory_space<vmem>>, vector<1x512xf32>
    %5 = vector.broadcast %3 : vector<8x1xf32> to vector<8x512xf32>
    %6 = vector.broadcast %4 : vector<1x512xf32> to vector<8x512xf32>
    %7 = arith.mulf %5, %6 : vector<8x512xf32>
    %c0_5 = arith.constant 0 : index
    %c0_6 = arith.constant 0 : index
    %8 = vector.load %arg3[%c0_5, %c0_6] : memref<1x512xf32, #tpu.memory_space<vmem>>, vector<1x512xf32>
    %9 = vector.broadcast %8 : vector<1x512xf32> to vector<8x512xf32>
    %10 = arith.addf %7, %9 : vector<8x512xf32>
    %11 = arith.truncf %0 : vector<8x128xf32> to vector<8x128xbf16>
    %c0_7 = arith.constant 0 : index
    %c0_8 = arith.constant 0 : index
    %12 = vector.load %arg2[%c0_7, %c0_8] : memref<128x512xbf16, #tpu.memory_space<vmem>>, vector<128x512xbf16>
    %cst_9 = arith.constant dense<0.000000e+00> : vector<8x512xf32>
    %13 = tpu.matmul %11, %12, %cst_9 {dimension_numbers = #tpu.dot_dimension_numbers<[1], [0], [0], [1], [0, 0, 1, 1], [], []>} : vector<8x128xbf16>, vector<128x512xbf16>, vector<8x512xf32> -> vector<8x512xf32>
    %14 = arith.addf %10, %13 : vector<8x512xf32>
    %15 = math.tanh %14 : vector<8x512xf32>
    %16 = vector.extract_strided_slice %15 {offsets = [0, 0], sizes = [8, 128], strides = [1, 1]} : vector<8x512xf32> to vector<8x128xf32>
    %cst_10 = arith.constant 5.000000e-01 : f32
    %17 = vector.broadcast %cst_10 : f32 to vector<8x128xf32>
    %18 = arith.mulf %17, %16 : vector<8x128xf32>
    %cst_11 = arith.constant 5.000000e-01 : f32
    %19 = vector.broadcast %cst_11 : f32 to vector<8x128xf32>
    %20 = arith.addf %18, %19 : vector<8x128xf32>
    %21 = vector.extract_strided_slice %15 {offsets = [0, 128], sizes = [8, 128], strides = [1, 1]} : vector<8x512xf32> to vector<8x128xf32>
    %cst_12 = arith.constant 5.000000e-01 : f32
    %22 = vector.broadcast %cst_12 : f32 to vector<8x128xf32>
    %23 = arith.mulf %22, %21 : vector<8x128xf32>
    %cst_13 = arith.constant 5.000000e-01 : f32
    %24 = vector.broadcast %cst_13 : f32 to vector<8x128xf32>
    %25 = arith.addf %23, %24 : vector<8x128xf32>
    %26 = vector.extract_strided_slice %15 {offsets = [0, 256], sizes = [8, 128], strides = [1, 1]} : vector<8x512xf32> to vector<8x128xf32>
    %27 = vector.extract_strided_slice %15 {offsets = [0, 384], sizes = [8, 128], strides = [1, 1]} : vector<8x512xf32> to vector<8x128xf32>
    %cst_14 = arith.constant 5.000000e-01 : f32
    %28 = vector.broadcast %cst_14 : f32 to vector<8x128xf32>
    %29 = arith.mulf %28, %27 : vector<8x128xf32>
    %cst_15 = arith.constant 5.000000e-01 : f32
    %30 = vector.broadcast %cst_15 : f32 to vector<8x128xf32>
    %31 = arith.addf %29, %30 : vector<8x128xf32>
    %32 = arith.mulf %25, %1 : vector<8x128xf32>
    %33 = arith.mulf %20, %26 : vector<8x128xf32>
    %34 = arith.addf %32, %33 : vector<8x128xf32>
    %35 = math.tanh %34 : vector<8x128xf32>
    %36 = arith.mulf %31, %35 : vector<8x128xf32>
    %c1 = arith.constant 1 : index
    %c0_16 = arith.constant 0 : index
    %c0_17 = arith.constant 0 : index
    %37 = vector.load %arg0[%c1, %c0_16, %c0_17] : memref<8x8x1xf32, #tpu.memory_space<vmem>>, vector<1x8x1xf32>
    %38 = vector.shape_cast %37 : vector<1x8x1xf32> to vector<8x1xf32>
    %c0_18 = arith.constant 0 : index
    %c0_19 = arith.constant 0 : index
    %39 = vector.load %arg1[%c0_18, %c0_19] : memref<1x512xf32, #tpu.memory_space<vmem>>, vector<1x512xf32>
    %40 = vector.broadcast %38 : vector<8x1xf32> to vector<8x512xf32>
    %41 = vector.broadcast %39 : vector<1x512xf32> to vector<8x512xf32>
    %42 = arith.mulf %40, %41 : vector<8x512xf32>
    %c0_20 = arith.constant 0 : index
    %c0_21 = arith.constant 0 : index
    %43 = vector.load %arg3[%c0_20, %c0_21] : memref<1x512xf32, #tpu.memory_space<vmem>>, vector<1x512xf32>
    %44 = vector.broadcast %43 : vector<1x512xf32> to vector<8x512xf32>
    %45 = arith.addf %42, %44 : vector<8x512xf32>
    %46 = arith.truncf %36 : vector<8x128xf32> to vector<8x128xbf16>
    %c0_22 = arith.constant 0 : index
    %c0_23 = arith.constant 0 : index
    %47 = vector.load %arg2[%c0_22, %c0_23] : memref<128x512xbf16, #tpu.memory_space<vmem>>, vector<128x512xbf16>
    %cst_24 = arith.constant dense<0.000000e+00> : vector<8x512xf32>
    %48 = tpu.matmul %46, %47, %cst_24 {dimension_numbers = #tpu.dot_dimension_numbers<[1], [0], [0], [1], [0, 0, 1, 1], [], []>} : vector<8x128xbf16>, vector<128x512xbf16>, vector<8x512xf32> -> vector<8x512xf32>
    %49 = arith.addf %45, %48 : vector<8x512xf32>
    %50 = math.tanh %49 : vector<8x512xf32>
    %51 = vector.extract_strided_slice %50 {offsets = [0, 0], sizes = [8, 128], strides = [1, 1]} : vector<8x512xf32> to vector<8x128xf32>
    %cst_25 = arith.constant 5.000000e-01 : f32
    %52 = vector.broadcast %cst_25 : f32 to vector<8x128xf32>
    %53 = arith.mulf %52, %51 : vector<8x128xf32>
    %cst_26 = arith.constant 5.000000e-01 : f32
    %54 = vector.broadcast %cst_26 : f32 to vector<8x128xf32>
    %55 = arith.addf %53, %54 : vector<8x128xf32>
    %56 = vector.extract_strided_slice %50 {offsets = [0, 128], sizes = [8, 128], strides = [1, 1]} : vector<8x512xf32> to vector<8x128xf32>
    %cst_27 = arith.constant 5.000000e-01 : f32
    %57 = vector.broadcast %cst_27 : f32 to vector<8x128xf32>
    %58 = arith.mulf %57, %56 : vector<8x128xf32>
    %cst_28 = arith.constant 5.000000e-01 : f32
    %59 = vector.broadcast %cst_28 : f32 to vector<8x128xf32>
    %60 = arith.addf %58, %59 : vector<8x128xf32>
    %61 = vector.extract_strided_slice %50 {offsets = [0, 256], sizes = [8, 128], strides = [1, 1]} : vector<8x512xf32> to vector<8x128xf32>
    %62 = vector.extract_strided_slice %50 {offsets = [0, 384], sizes = [8, 128], strides = [1, 1]} : vector<8x512xf32> to vector<8x128xf32>
    %cst_29 = arith.constant 5.000000e-01 : f32
    %63 = vector.broadcast %cst_29 : f32 to vector<8x128xf32>
    %64 = arith.mulf %63, %62 : vector<8x128xf32>
    %cst_30 = arith.constant 5.000000e-01 : f32
    %65 = vector.broadcast %cst_30 : f32 to vector<8x128xf32>
    %66 = arith.addf %64, %65 : vector<8x128xf32>
    %67 = arith.mulf %60, %34 : vector<8x128xf32>
    %68 = arith.mulf %55, %61 : vector<8x128xf32>
    %69 = arith.addf %67, %68 : vector<8x128xf32>
    %70 = math.tanh %69 : vector<8x128xf32>
    %71 = arith.mulf %66, %70 : vector<8x128xf32>
    %c2 = arith.constant 2 : index
    %c0_31 = arith.constant 0 : index
    %c0_32 = arith.constant 0 : index
    %72 = vector.load %arg0[%c2, %c0_31, %c0_32] : memref<8x8x1xf32, #tpu.memory_space<vmem>>, vector<1x8x1xf32>
    %73 = vector.shape_cast %72 : vector<1x8x1xf32> to vector<8x1xf32>
    %c0_33 = arith.constant 0 : index
    %c0_34 = arith.constant 0 : index
    %74 = vector.load %arg1[%c0_33, %c0_34] : memref<1x512xf32, #tpu.memory_space<vmem>>, vector<1x512xf32>
    %75 = vector.broadcast %73 : vector<8x1xf32> to vector<8x512xf32>
    %76 = vector.broadcast %74 : vector<1x512xf32> to vector<8x512xf32>
    %77 = arith.mulf %75, %76 : vector<8x512xf32>
    %c0_35 = arith.constant 0 : index
    %c0_36 = arith.constant 0 : index
    %78 = vector.load %arg3[%c0_35, %c0_36] : memref<1x512xf32, #tpu.memory_space<vmem>>, vector<1x512xf32>
    %79 = vector.broadcast %78 : vector<1x512xf32> to vector<8x512xf32>
    %80 = arith.addf %77, %79 : vector<8x512xf32>
    %81 = arith.truncf %71 : vector<8x128xf32> to vector<8x128xbf16>
    %c0_37 = arith.constant 0 : index
    %c0_38 = arith.constant 0 : index
    %82 = vector.load %arg2[%c0_37, %c0_38] : memref<128x512xbf16, #tpu.memory_space<vmem>>, vector<128x512xbf16>
    %cst_39 = arith.constant dense<0.000000e+00> : vector<8x512xf32>
    %83 = tpu.matmul %81, %82, %cst_39 {dimension_numbers = #tpu.dot_dimension_numbers<[1], [0], [0], [1], [0, 0, 1, 1], [], []>} : vector<8x128xbf16>, vector<128x512xbf16>, vector<8x512xf32> -> vector<8x512xf32>
    %84 = arith.addf %80, %83 : vector<8x512xf32>
    %85 = math.tanh %84 : vector<8x512xf32>
    %86 = vector.extract_strided_slice %85 {offsets = [0, 0], sizes = [8, 128], strides = [1, 1]} : vector<8x512xf32> to vector<8x128xf32>
    %cst_40 = arith.constant 5.000000e-01 : f32
    %87 = vector.broadcast %cst_40 : f32 to vector<8x128xf32>
    %88 = arith.mulf %87, %86 : vector<8x128xf32>
    %cst_41 = arith.constant 5.000000e-01 : f32
    %89 = vector.broadcast %cst_41 : f32 to vector<8x128xf32>
    %90 = arith.addf %88, %89 : vector<8x128xf32>
    %91 = vector.extract_strided_slice %85 {offsets = [0, 128], sizes = [8, 128], strides = [1, 1]} : vector<8x512xf32> to vector<8x128xf32>
    %cst_42 = arith.constant 5.000000e-01 : f32
    %92 = vector.broadcast %cst_42 : f32 to vector<8x128xf32>
    %93 = arith.mulf %92, %91 : vector<8x128xf32>
    %cst_43 = arith.constant 5.000000e-01 : f32
    %94 = vector.broadcast %cst_43 : f32 to vector<8x128xf32>
    %95 = arith.addf %93, %94 : vector<8x128xf32>
    %96 = vector.extract_strided_slice %85 {offsets = [0, 256], sizes = [8, 128], strides = [1, 1]} : vector<8x512xf32> to vector<8x128xf32>
    %97 = vector.extract_strided_slice %85 {offsets = [0, 384], sizes = [8, 128], strides = [1, 1]} : vector<8x512xf32> to vector<8x128xf32>
    %cst_44 = arith.constant 5.000000e-01 : f32
    %98 = vector.broadcast %cst_44 : f32 to vector<8x128xf32>
    %99 = arith.mulf %98, %97 : vector<8x128xf32>
    %cst_45 = arith.constant 5.000000e-01 : f32
    %100 = vector.broadcast %cst_45 : f32 to vector<8x128xf32>
    %101 = arith.addf %99, %100 : vector<8x128xf32>
    %102 = arith.mulf %95, %69 : vector<8x128xf32>
    %103 = arith.mulf %90, %96 : vector<8x128xf32>
    %104 = arith.addf %102, %103 : vector<8x128xf32>
    %105 = math.tanh %104 : vector<8x128xf32>
    %106 = arith.mulf %101, %105 : vector<8x128xf32>
    %c3 = arith.constant 3 : index
    %c0_46 = arith.constant 0 : index
    %c0_47 = arith.constant 0 : index
    %107 = vector.load %arg0[%c3, %c0_46, %c0_47] : memref<8x8x1xf32, #tpu.memory_space<vmem>>, vector<1x8x1xf32>
    %108 = vector.shape_cast %107 : vector<1x8x1xf32> to vector<8x1xf32>
    %c0_48 = arith.constant 0 : index
    %c0_49 = arith.constant 0 : index
    %109 = vector.load %arg1[%c0_48, %c0_49] : memref<1x512xf32, #tpu.memory_space<vmem>>, vector<1x512xf32>
    %110 = vector.broadcast %108 : vector<8x1xf32> to vector<8x512xf32>
    %111 = vector.broadcast %109 : vector<1x512xf32> to vector<8x512xf32>
    %112 = arith.mulf %110, %111 : vector<8x512xf32>
    %c0_50 = arith.constant 0 : index
    %c0_51 = arith.constant 0 : index
    %113 = vector.load %arg3[%c0_50, %c0_51] : memref<1x512xf32, #tpu.memory_space<vmem>>, vector<1x512xf32>
    %114 = vector.broadcast %113 : vector<1x512xf32> to vector<8x512xf32>
    %115 = arith.addf %112, %114 : vector<8x512xf32>
    %116 = arith.truncf %106 : vector<8x128xf32> to vector<8x128xbf16>
    %c0_52 = arith.constant 0 : index
    %c0_53 = arith.constant 0 : index
    %117 = vector.load %arg2[%c0_52, %c0_53] : memref<128x512xbf16, #tpu.memory_space<vmem>>, vector<128x512xbf16>
    %cst_54 = arith.constant dense<0.000000e+00> : vector<8x512xf32>
    %118 = tpu.matmul %116, %117, %cst_54 {dimension_numbers = #tpu.dot_dimension_numbers<[1], [0], [0], [1], [0, 0, 1, 1], [], []>} : vector<8x128xbf16>, vector<128x512xbf16>, vector<8x512xf32> -> vector<8x512xf32>
    %119 = arith.addf %115, %118 : vector<8x512xf32>
    %120 = math.tanh %119 : vector<8x512xf32>
    %121 = vector.extract_strided_slice %120 {offsets = [0, 0], sizes = [8, 128], strides = [1, 1]} : vector<8x512xf32> to vector<8x128xf32>
    %cst_55 = arith.constant 5.000000e-01 : f32
    %122 = vector.broadcast %cst_55 : f32 to vector<8x128xf32>
    %123 = arith.mulf %122, %121 : vector<8x128xf32>
    %cst_56 = arith.constant 5.000000e-01 : f32
    %124 = vector.broadcast %cst_56 : f32 to vector<8x128xf32>
    %125 = arith.addf %123, %124 : vector<8x128xf32>
    %126 = vector.extract_strided_slice %120 {offsets = [0, 128], sizes = [8, 128], strides = [1, 1]} : vector<8x512xf32> to vector<8x128xf32>
    %cst_57 = arith.constant 5.000000e-01 : f32
    %127 = vector.broadcast %cst_57 : f32 to vector<8x128xf32>
    %128 = arith.mulf %127, %126 : vector<8x128xf32>
    %cst_58 = arith.constant 5.000000e-01 : f32
    %129 = vector.broadcast %cst_58 : f32 to vector<8x128xf32>
    %130 = arith.addf %128, %129 : vector<8x128xf32>
    %131 = vector.extract_strided_slice %120 {offsets = [0, 256], sizes = [8, 128], strides = [1, 1]} : vector<8x512xf32> to vector<8x128xf32>
    %132 = vector.extract_strided_slice %120 {offsets = [0, 384], sizes = [8, 128], strides = [1, 1]} : vector<8x512xf32> to vector<8x128xf32>
    %cst_59 = arith.constant 5.000000e-01 : f32
    %133 = vector.broadcast %cst_59 : f32 to vector<8x128xf32>
    %134 = arith.mulf %133, %132 : vector<8x128xf32>
    %cst_60 = arith.constant 5.000000e-01 : f32
    %135 = vector.broadcast %cst_60 : f32 to vector<8x128xf32>
    %136 = arith.addf %134, %135 : vector<8x128xf32>
    %137 = arith.mulf %130, %104 : vector<8x128xf32>
    %138 = arith.mulf %125, %131 : vector<8x128xf32>
    %139 = arith.addf %137, %138 : vector<8x128xf32>
    %140 = math.tanh %139 : vector<8x128xf32>
    %141 = arith.mulf %136, %140 : vector<8x128xf32>
    %c4 = arith.constant 4 : index
    %c0_61 = arith.constant 0 : index
    %c0_62 = arith.constant 0 : index
    %142 = vector.load %arg0[%c4, %c0_61, %c0_62] : memref<8x8x1xf32, #tpu.memory_space<vmem>>, vector<1x8x1xf32>
    %143 = vector.shape_cast %142 : vector<1x8x1xf32> to vector<8x1xf32>
    %c0_63 = arith.constant 0 : index
    %c0_64 = arith.constant 0 : index
    %144 = vector.load %arg1[%c0_63, %c0_64] : memref<1x512xf32, #tpu.memory_space<vmem>>, vector<1x512xf32>
    %145 = vector.broadcast %143 : vector<8x1xf32> to vector<8x512xf32>
    %146 = vector.broadcast %144 : vector<1x512xf32> to vector<8x512xf32>
    %147 = arith.mulf %145, %146 : vector<8x512xf32>
    %c0_65 = arith.constant 0 : index
    %c0_66 = arith.constant 0 : index
    %148 = vector.load %arg3[%c0_65, %c0_66] : memref<1x512xf32, #tpu.memory_space<vmem>>, vector<1x512xf32>
    %149 = vector.broadcast %148 : vector<1x512xf32> to vector<8x512xf32>
    %150 = arith.addf %147, %149 : vector<8x512xf32>
    %151 = arith.truncf %141 : vector<8x128xf32> to vector<8x128xbf16>
    %c0_67 = arith.constant 0 : index
    %c0_68 = arith.constant 0 : index
    %152 = vector.load %arg2[%c0_67, %c0_68] : memref<128x512xbf16, #tpu.memory_space<vmem>>, vector<128x512xbf16>
    %cst_69 = arith.constant dense<0.000000e+00> : vector<8x512xf32>
    %153 = tpu.matmul %151, %152, %cst_69 {dimension_numbers = #tpu.dot_dimension_numbers<[1], [0], [0], [1], [0, 0, 1, 1], [], []>} : vector<8x128xbf16>, vector<128x512xbf16>, vector<8x512xf32> -> vector<8x512xf32>
    %154 = arith.addf %150, %153 : vector<8x512xf32>
    %155 = math.tanh %154 : vector<8x512xf32>
    %156 = vector.extract_strided_slice %155 {offsets = [0, 0], sizes = [8, 128], strides = [1, 1]} : vector<8x512xf32> to vector<8x128xf32>
    %cst_70 = arith.constant 5.000000e-01 : f32
    %157 = vector.broadcast %cst_70 : f32 to vector<8x128xf32>
    %158 = arith.mulf %157, %156 : vector<8x128xf32>
    %cst_71 = arith.constant 5.000000e-01 : f32
    %159 = vector.broadcast %cst_71 : f32 to vector<8x128xf32>
    %160 = arith.addf %158, %159 : vector<8x128xf32>
    %161 = vector.extract_strided_slice %155 {offsets = [0, 128], sizes = [8, 128], strides = [1, 1]} : vector<8x512xf32> to vector<8x128xf32>
    %cst_72 = arith.constant 5.000000e-01 : f32
    %162 = vector.broadcast %cst_72 : f32 to vector<8x128xf32>
    %163 = arith.mulf %162, %161 : vector<8x128xf32>
    %cst_73 = arith.constant 5.000000e-01 : f32
    %164 = vector.broadcast %cst_73 : f32 to vector<8x128xf32>
    %165 = arith.addf %163, %164 : vector<8x128xf32>
    %166 = vector.extract_strided_slice %155 {offsets = [0, 256], sizes = [8, 128], strides = [1, 1]} : vector<8x512xf32> to vector<8x128xf32>
    %167 = vector.extract_strided_slice %155 {offsets = [0, 384], sizes = [8, 128], strides = [1, 1]} : vector<8x512xf32> to vector<8x128xf32>
    %cst_74 = arith.constant 5.000000e-01 : f32
    %168 = vector.broadcast %cst_74 : f32 to vector<8x128xf32>
    %169 = arith.mulf %168, %167 : vector<8x128xf32>
    %cst_75 = arith.constant 5.000000e-01 : f32
    %170 = vector.broadcast %cst_75 : f32 to vector<8x128xf32>
    %171 = arith.addf %169, %170 : vector<8x128xf32>
    %172 = arith.mulf %165, %139 : vector<8x128xf32>
    %173 = arith.mulf %160, %166 : vector<8x128xf32>
    %174 = arith.addf %172, %173 : vector<8x128xf32>
    %175 = math.tanh %174 : vector<8x128xf32>
    %176 = arith.mulf %171, %175 : vector<8x128xf32>
    %c5 = arith.constant 5 : index
    %c0_76 = arith.constant 0 : index
    %c0_77 = arith.constant 0 : index
    %177 = vector.load %arg0[%c5, %c0_76, %c0_77] : memref<8x8x1xf32, #tpu.memory_space<vmem>>, vector<1x8x1xf32>
    %178 = vector.shape_cast %177 : vector<1x8x1xf32> to vector<8x1xf32>
    %c0_78 = arith.constant 0 : index
    %c0_79 = arith.constant 0 : index
    %179 = vector.load %arg1[%c0_78, %c0_79] : memref<1x512xf32, #tpu.memory_space<vmem>>, vector<1x512xf32>
    %180 = vector.broadcast %178 : vector<8x1xf32> to vector<8x512xf32>
    %181 = vector.broadcast %179 : vector<1x512xf32> to vector<8x512xf32>
    %182 = arith.mulf %180, %181 : vector<8x512xf32>
    %c0_80 = arith.constant 0 : index
    %c0_81 = arith.constant 0 : index
    %183 = vector.load %arg3[%c0_80, %c0_81] : memref<1x512xf32, #tpu.memory_space<vmem>>, vector<1x512xf32>
    %184 = vector.broadcast %183 : vector<1x512xf32> to vector<8x512xf32>
    %185 = arith.addf %182, %184 : vector<8x512xf32>
    %186 = arith.truncf %176 : vector<8x128xf32> to vector<8x128xbf16>
    %c0_82 = arith.constant 0 : index
    %c0_83 = arith.constant 0 : index
    %187 = vector.load %arg2[%c0_82, %c0_83] : memref<128x512xbf16, #tpu.memory_space<vmem>>, vector<128x512xbf16>
    %cst_84 = arith.constant dense<0.000000e+00> : vector<8x512xf32>
    %188 = tpu.matmul %186, %187, %cst_84 {dimension_numbers = #tpu.dot_dimension_numbers<[1], [0], [0], [1], [0, 0, 1, 1], [], []>} : vector<8x128xbf16>, vector<128x512xbf16>, vector<8x512xf32> -> vector<8x512xf32>
    %189 = arith.addf %185, %188 : vector<8x512xf32>
    %190 = math.tanh %189 : vector<8x512xf32>
    %191 = vector.extract_strided_slice %190 {offsets = [0, 0], sizes = [8, 128], strides = [1, 1]} : vector<8x512xf32> to vector<8x128xf32>
    %cst_85 = arith.constant 5.000000e-01 : f32
    %192 = vector.broadcast %cst_85 : f32 to vector<8x128xf32>
    %193 = arith.mulf %192, %191 : vector<8x128xf32>
    %cst_86 = arith.constant 5.000000e-01 : f32
    %194 = vector.broadcast %cst_86 : f32 to vector<8x128xf32>
    %195 = arith.addf %193, %194 : vector<8x128xf32>
    %196 = vector.extract_strided_slice %190 {offsets = [0, 128], sizes = [8, 128], strides = [1, 1]} : vector<8x512xf32> to vector<8x128xf32>
    %cst_87 = arith.constant 5.000000e-01 : f32
    %197 = vector.broadcast %cst_87 : f32 to vector<8x128xf32>
    %198 = arith.mulf %197, %196 : vector<8x128xf32>
    %cst_88 = arith.constant 5.000000e-01 : f32
    %199 = vector.broadcast %cst_88 : f32 to vector<8x128xf32>
    %200 = arith.addf %198, %199 : vector<8x128xf32>
    %201 = vector.extract_strided_slice %190 {offsets = [0, 256], sizes = [8, 128], strides = [1, 1]} : vector<8x512xf32> to vector<8x128xf32>
    %202 = vector.extract_strided_slice %190 {offsets = [0, 384], sizes = [8, 128], strides = [1, 1]} : vector<8x512xf32> to vector<8x128xf32>
    %cst_89 = arith.constant 5.000000e-01 : f32
    %203 = vector.broadcast %cst_89 : f32 to vector<8x128xf32>
    %204 = arith.mulf %203, %202 : vector<8x128xf32>
    %cst_90 = arith.constant 5.000000e-01 : f32
    %205 = vector.broadcast %cst_90 : f32 to vector<8x128xf32>
    %206 = arith.addf %204, %205 : vector<8x128xf32>
    %207 = arith.mulf %200, %174 : vector<8x128xf32>
    %208 = arith.mulf %195, %201 : vector<8x128xf32>
    %209 = arith.addf %207, %208 : vector<8x128xf32>
    %210 = math.tanh %209 : vector<8x128xf32>
    %211 = arith.mulf %206, %210 : vector<8x128xf32>
    %c6 = arith.constant 6 : index
    %c0_91 = arith.constant 0 : index
    %c0_92 = arith.constant 0 : index
    %212 = vector.load %arg0[%c6, %c0_91, %c0_92] : memref<8x8x1xf32, #tpu.memory_space<vmem>>, vector<1x8x1xf32>
    %213 = vector.shape_cast %212 : vector<1x8x1xf32> to vector<8x1xf32>
    %c0_93 = arith.constant 0 : index
    %c0_94 = arith.constant 0 : index
    %214 = vector.load %arg1[%c0_93, %c0_94] : memref<1x512xf32, #tpu.memory_space<vmem>>, vector<1x512xf32>
    %215 = vector.broadcast %213 : vector<8x1xf32> to vector<8x512xf32>
    %216 = vector.broadcast %214 : vector<1x512xf32> to vector<8x512xf32>
    %217 = arith.mulf %215, %216 : vector<8x512xf32>
    %c0_95 = arith.constant 0 : index
    %c0_96 = arith.constant 0 : index
    %218 = vector.load %arg3[%c0_95, %c0_96] : memref<1x512xf32, #tpu.memory_space<vmem>>, vector<1x512xf32>
    %219 = vector.broadcast %218 : vector<1x512xf32> to vector<8x512xf32>
    %220 = arith.addf %217, %219 : vector<8x512xf32>
    %221 = arith.truncf %211 : vector<8x128xf32> to vector<8x128xbf16>
    %c0_97 = arith.constant 0 : index
    %c0_98 = arith.constant 0 : index
    %222 = vector.load %arg2[%c0_97, %c0_98] : memref<128x512xbf16, #tpu.memory_space<vmem>>, vector<128x512xbf16>
    %cst_99 = arith.constant dense<0.000000e+00> : vector<8x512xf32>
    %223 = tpu.matmul %221, %222, %cst_99 {dimension_numbers = #tpu.dot_dimension_numbers<[1], [0], [0], [1], [0, 0, 1, 1], [], []>} : vector<8x128xbf16>, vector<128x512xbf16>, vector<8x512xf32> -> vector<8x512xf32>
    %224 = arith.addf %220, %223 : vector<8x512xf32>
    %225 = math.tanh %224 : vector<8x512xf32>
    %226 = vector.extract_strided_slice %225 {offsets = [0, 0], sizes = [8, 128], strides = [1, 1]} : vector<8x512xf32> to vector<8x128xf32>
    %cst_100 = arith.constant 5.000000e-01 : f32
    %227 = vector.broadcast %cst_100 : f32 to vector<8x128xf32>
    %228 = arith.mulf %227, %226 : vector<8x128xf32>
    %cst_101 = arith.constant 5.000000e-01 : f32
    %229 = vector.broadcast %cst_101 : f32 to vector<8x128xf32>
    %230 = arith.addf %228, %229 : vector<8x128xf32>
    %231 = vector.extract_strided_slice %225 {offsets = [0, 128], sizes = [8, 128], strides = [1, 1]} : vector<8x512xf32> to vector<8x128xf32>
    %cst_102 = arith.constant 5.000000e-01 : f32
    %232 = vector.broadcast %cst_102 : f32 to vector<8x128xf32>
    %233 = arith.mulf %232, %231 : vector<8x128xf32>
    %cst_103 = arith.constant 5.000000e-01 : f32
    %234 = vector.broadcast %cst_103 : f32 to vector<8x128xf32>
    %235 = arith.addf %233, %234 : vector<8x128xf32>
    %236 = vector.extract_strided_slice %225 {offsets = [0, 256], sizes = [8, 128], strides = [1, 1]} : vector<8x512xf32> to vector<8x128xf32>
    %237 = vector.extract_strided_slice %225 {offsets = [0, 384], sizes = [8, 128], strides = [1, 1]} : vector<8x512xf32> to vector<8x128xf32>
    %cst_104 = arith.constant 5.000000e-01 : f32
    %238 = vector.broadcast %cst_104 : f32 to vector<8x128xf32>
    %239 = arith.mulf %238, %237 : vector<8x128xf32>
    %cst_105 = arith.constant 5.000000e-01 : f32
    %240 = vector.broadcast %cst_105 : f32 to vector<8x128xf32>
    %241 = arith.addf %239, %240 : vector<8x128xf32>
    %242 = arith.mulf %235, %209 : vector<8x128xf32>
    %243 = arith.mulf %230, %236 : vector<8x128xf32>
    %244 = arith.addf %242, %243 : vector<8x128xf32>
    %245 = math.tanh %244 : vector<8x128xf32>
    %246 = arith.mulf %241, %245 : vector<8x128xf32>
    %c7 = arith.constant 7 : index
    %c0_106 = arith.constant 0 : index
    %c0_107 = arith.constant 0 : index
    %247 = vector.load %arg0[%c7, %c0_106, %c0_107] : memref<8x8x1xf32, #tpu.memory_space<vmem>>, vector<1x8x1xf32>
    %248 = vector.shape_cast %247 : vector<1x8x1xf32> to vector<8x1xf32>
    %c0_108 = arith.constant 0 : index
    %c0_109 = arith.constant 0 : index
    %249 = vector.load %arg1[%c0_108, %c0_109] : memref<1x512xf32, #tpu.memory_space<vmem>>, vector<1x512xf32>
    %250 = vector.broadcast %248 : vector<8x1xf32> to vector<8x512xf32>
    %251 = vector.broadcast %249 : vector<1x512xf32> to vector<8x512xf32>
    %252 = arith.mulf %250, %251 : vector<8x512xf32>
    %c0_110 = arith.constant 0 : index
    %c0_111 = arith.constant 0 : index
    %253 = vector.load %arg3[%c0_110, %c0_111] : memref<1x512xf32, #tpu.memory_space<vmem>>, vector<1x512xf32>
    %254 = vector.broadcast %253 : vector<1x512xf32> to vector<8x512xf32>
    %255 = arith.addf %252, %254 : vector<8x512xf32>
    %256 = arith.truncf %246 : vector<8x128xf32> to vector<8x128xbf16>
    %c0_112 = arith.constant 0 : index
    %c0_113 = arith.constant 0 : index
    %257 = vector.load %arg2[%c0_112, %c0_113] : memref<128x512xbf16, #tpu.memory_space<vmem>>, vector<128x512xbf16>
    %cst_114 = arith.constant dense<0.000000e+00> : vector<8x512xf32>
    %258 = tpu.matmul %256, %257, %cst_114 {dimension_numbers = #tpu.dot_dimension_numbers<[1], [0], [0], [1], [0, 0, 1, 1], [], []>} : vector<8x128xbf16>, vector<128x512xbf16>, vector<8x512xf32> -> vector<8x512xf32>
    %259 = arith.addf %255, %258 : vector<8x512xf32>
    %260 = math.tanh %259 : vector<8x512xf32>
    %261 = vector.extract_strided_slice %260 {offsets = [0, 0], sizes = [8, 128], strides = [1, 1]} : vector<8x512xf32> to vector<8x128xf32>
    %cst_115 = arith.constant 5.000000e-01 : f32
    %262 = vector.broadcast %cst_115 : f32 to vector<8x128xf32>
    %263 = arith.mulf %262, %261 : vector<8x128xf32>
    %cst_116 = arith.constant 5.000000e-01 : f32
    %264 = vector.broadcast %cst_116 : f32 to vector<8x128xf32>
    %265 = arith.addf %263, %264 : vector<8x128xf32>
    %266 = vector.extract_strided_slice %260 {offsets = [0, 128], sizes = [8, 128], strides = [1, 1]} : vector<8x512xf32> to vector<8x128xf32>
    %cst_117 = arith.constant 5.000000e-01 : f32
    %267 = vector.broadcast %cst_117 : f32 to vector<8x128xf32>
    %268 = arith.mulf %267, %266 : vector<8x128xf32>
    %cst_118 = arith.constant 5.000000e-01 : f32
    %269 = vector.broadcast %cst_118 : f32 to vector<8x128xf32>
    %270 = arith.addf %268, %269 : vector<8x128xf32>
    %271 = vector.extract_strided_slice %260 {offsets = [0, 256], sizes = [8, 128], strides = [1, 1]} : vector<8x512xf32> to vector<8x128xf32>
    %272 = vector.extract_strided_slice %260 {offsets = [0, 384], sizes = [8, 128], strides = [1, 1]} : vector<8x512xf32> to vector<8x128xf32>
    %cst_119 = arith.constant 5.000000e-01 : f32
    %273 = vector.broadcast %cst_119 : f32 to vector<8x128xf32>
    %274 = arith.mulf %273, %272 : vector<8x128xf32>
    %cst_120 = arith.constant 5.000000e-01 : f32
    %275 = vector.broadcast %cst_120 : f32 to vector<8x128xf32>
    %276 = arith.addf %274, %275 : vector<8x128xf32>
    %277 = arith.mulf %270, %244 : vector<8x128xf32>
    %278 = arith.mulf %265, %271 : vector<8x128xf32>
    %279 = arith.addf %277, %278 : vector<8x128xf32>
    %280 = math.tanh %279 : vector<8x128xf32>
    %281 = arith.mulf %276, %280 : vector<8x128xf32>
    %c0_121 = arith.constant 0 : index
    %c0_122 = arith.constant 0 : index
    %282 = vector.load %arg4[%c0_121, %c0_122] : memref<1x128xf32, #tpu.memory_space<vmem>>, vector<1x128xf32>
    %283 = vector.broadcast %282 : vector<1x128xf32> to vector<8x128xf32>
    %284 = arith.mulf %281, %283 : vector<8x128xf32>
    %cst_123 = arith.constant dense<0.000000e+00> : vector<8xf32>
    %285 = vector.multi_reduction <add>, %284, %cst_123 [1] : vector<8x128xf32> to vector<8xf32>
    %286 = vector.shape_cast %285 : vector<8xf32> to vector<8x1xf32>
    %287 = vector.shape_cast %286 : vector<8x1xf32> to vector<8x1xf32>
    %288 = vector.broadcast %287 : vector<8x1xf32> to vector<8x128xf32>
    %c0_124 = arith.constant 0 : index
    %c0_125 = arith.constant 0 : index
    %289 = vector.load %arg5[%c0_124, %c0_125] : memref<1x128xf32, #tpu.memory_space<vmem>>, vector<1x128xf32>
    %290 = vector.broadcast %289 : vector<1x128xf32> to vector<8x128xf32>
    %291 = arith.addf %288, %290 : vector<8x128xf32>
    %c0_126 = arith.constant 0 : index
    %c0_127 = arith.constant 0 : index
    %292 = vector.load %arg6[%c0_126, %c0_127] : memref<8x128xf32, #tpu.memory_space<vmem>>, vector<8x128xf32>
    tpu.vector_store %arg6[%c0_126, %c0_127], %291 {strides = array<i32>} : memref<8x128xf32, #tpu.memory_space<vmem>>, vector<8x128xf32>,
    return
  }
}

</mosaic_0001>

<llo_original>
// kernel: tpu_custom_call.1
$region0: #{tpu_custom_call.1}
  #allocation0 [shape = 'u32[]', space=smem, size = 0x4, offset = 0x4, fixed_abs, tag = 'smem constant byte address 0x4 - core index']
  #allocation1 [shape = 'u32[144,128]{1,0:T(1,128)}', space=vmem, size = 0x12000, scoped, tag = 'internal scratch']
  %s0 = inlined_call_operand.vmem [shape: f32[8,8,1], index: 0, kind: input, shape index: {}]
  %s1 = inlined_call_operand.vmem [shape: f32[1,512], index: 1, kind: input, shape index: {}]
  %s2 = inlined_call_operand.hbm [shape: bf16[128,512], index: 2, kind: input, shape index: {}]
  %s3 = inlined_call_operand.vmem [shape: f32[1,512], index: 3, kind: input, shape index: {}]
  %s4 = inlined_call_operand.vmem [shape: f32[1,128], index: 4, kind: input, shape index: {}]
  %s5 = inlined_call_operand.vmem [shape: f32[1,128], index: 5, kind: input, shape index: {}]
  %s6 = inlined_call_operand.hbm [shape: f32[8,128], index: 6, kind: output, shape index: {}]
  %s7 = sld [smem:[#allocation0]]
  $region38: #{tpu_custom_call.1} parent=0
    _
  %s9 = ssub.s32 1, %s7
  %s10 = scalar_select 0, %s9, %s7
  $region1: #{tpu_custom_call.1} parent=0
    #allocation2 [shape = 'u8[131072]{0}', space=vmem, size = 0x20000, scoped, tag = 'input window, operand 2, single buffered']
    #allocation3 [shape = 's32[1]{0}', space=sflag, size = 0x4, scoped, tag = 'scoped memory for tpu_custom_call.1']
    #allocation4 [shape = 's32[1]{0}', space=sflag, size = 0x4, scoped, tag = 'scoped memory for tpu_custom_call.1']
    #allocation5 [shape = 'u8[4096]{0}', space=vmem, size = 0x1000, scoped, tag = 'output window, operand 0, single buffered']
    %11 = vsyncpa [#allocation3], 0
    %12 = vsyncpa [#allocation4], 0
    // Predicated region
    $region2: #{tpu_custom_call.1} parent=1 // pred_check
      _
    $region3: #{tpu_custom_call.1} parent=1 // pred_check_branch
      %14 = sbr.rel (0) target = $region5
    $region4: #{tpu_custom_call.1} parent=1 // pred_region
      _
    $region5: #{tpu_custom_call.1} parent=1 // pred_fallthru
      _
    // Predicated region
    $region6: #{tpu_custom_call.1} parent=1 // pred_check
      _
    $region7: #{tpu_custom_call.1} parent=1 // pred_check_branch
      %16 = sbr.rel (0) target = $region9
    $region8: #{tpu_custom_call.1} parent=1 // pred_region
      _
    $region9: #{tpu_custom_call.1} parent=1 // pred_fallthru
      _
    // Predicated region
    $region10: #{tpu_custom_call.1} parent=1 // pred_check
      _
    $region11: #{tpu_custom_call.1} parent=1 // pred_check_branch
      %18 = sbr.rel (0) target = $region13
    $region12: #{tpu_custom_call.1} parent=1 // pred_region
      %s20 = ssub.s32 4096, 4096
      %21 = vsyncadd [#allocation3], %s20
      %s22 = sshll.u32 [#allocation2], 4
      %s23 = int_to_ptr.vmem [resolvable:$true] %s22
      %28 = dma.hbm_to_vmem [thread:$0]  %s2, 4096, %s23, [#allocation3], 256, 256, 16
    $region13: #{tpu_custom_call.1} parent=1 // pred_fallthru
      _
    // Predicated region
    $region14: #{tpu_custom_call.1} parent=1 // pred_check
      _
    $region15: #{tpu_custom_call.1} parent=1 // pred_check_branch
      %30 = sbr.rel (0) target = $region17
    $region16: #{tpu_custom_call.1} parent=1 // pred_region
      _
    $region17: #{tpu_custom_call.1} parent=1 // pred_fallthru
      _
    // Predicated region
    $region18: #{tpu_custom_call.1} parent=1 // pred_check
      _
    $region19: #{tpu_custom_call.1} parent=1 // pred_check_branch
      %32 = sbr.rel (0) target = $region21
    $region20: #{tpu_custom_call.1} parent=1 // pred_region
      _
    $region21: #{tpu_custom_call.1} parent=1 // pred_fallthru
      _
    // Predicated region
    $region22: #{tpu_custom_call.1} parent=1 // pred_check
      _
    $region23: #{tpu_custom_call.1} parent=1 // pred_check_branch
      %34 = sbr.rel (0) target = $region25
    $region24: #{tpu_custom_call.1} parent=1 // pred_region
      _
    $region25: #{tpu_custom_call.1} parent=1 // pred_fallthru
      _
    // Predicated region
    $region26: #{tpu_custom_call.1} parent=1 // pred_check
      _
    $region27: #{tpu_custom_call.1} parent=1 // pred_check_branch
      %36 = sbr.rel (0) target = $region29
    $region28: #{tpu_custom_call.1} parent=1 // pred_region
      %37 = dma.done [#allocation3], 4096
    $region29: #{tpu_custom_call.1} parent=1 // pred_fallthru
      _
    %v39 = vld [vmem:[%s0] sm:$0xff]
    %v40 = vld [vmem:[%s1] sm:$0xf]
    %42 = vset.pattern.permute.xlu0 0
    %43 = vperm.xlu0 %42, %v39
    %v44 = vpop.permute.xlu0 %43
    %v47 = vlaneseq
    %v48 = vshrl.u32 %v47, 7
    %v49 = vsub.s32 0, %v48
    %v50 = vrot.slane %v40, %v49
    %v51 = vlaneseq
    %v52 = vshrl.u32 %v51, 7
    %v53 = vsub.s32 1, %v52
    %v54 = vrot.slane %v40, %v53
    %v55 = vlaneseq
    %v56 = vshrl.u32 %v55, 7
    %v57 = vsub.s32 2, %v56
    %v58 = vrot.slane %v40, %v57
    %v59 = vlaneseq
    %v60 = vshrl.u32 %v59, 7
    %v61 = vsub.s32 3, %v60
    %v62 = vrot.slane %v40, %v61
    %v67 = vmul.f32 %v44, %v50
    %v68 = vmul.f32 %v44, %v54
    %v69 = vmul.f32 %v44, %v58
    %v70 = vmul.f32 %v44, %v62
    %v71 = vld [vmem:[%s3] sm:$0xf]
    %v73 = vlaneseq
    %v74 = vshrl.u32 %v73, 7
    %v75 = vsub.s32 0, %v74
    %v76 = vrot.slane %v71, %v75
    %v77 = vlaneseq
    %v78 = vshrl.u32 %v77, 7
    %v79 = vsub.s32 1, %v78
    %v80 = vrot.slane %v71, %v79
    %v81 = vlaneseq
    %v82 = vshrl.u32 %v81, 7
    %v83 = vsub.s32 2, %v82
    %v84 = vrot.slane %v71, %v83
    %v85 = vlaneseq
    %v86 = vshrl.u32 %v85, 7
    %v87 = vsub.s32 3, %v86
    %v88 = vrot.slane %v71, %v87
    %v93 = vadd.f32 %v67, %v76
    %v94 = vadd.f32 %v68, %v80
    %v95 = vadd.f32 %v69, %v84
    %v96 = vadd.f32 %v70, %v88
    %v97 = vld [vmem:[#allocation2] sm:$0xff]
    %v98 = vld [vmem:[#allocation2 + $0x8] sm:$0xff]
    %v99 = vld [vmem:[#allocation2 + $0x10] sm:$0xff]
    %v100 = vld [vmem:[#allocation2 + $0x18] sm:$0xff]
    %v101 = vld [vmem:[#allocation2 + $0x20] sm:$0xff]
    %v102 = vld [vmem:[#allocation2 + $0x28] sm:$0xff]
    %v103 = vld [vmem:[#allocation2 + $0x30] sm:$0xff]
    %v104 = vld [vmem:[#allocation2 + $0x38] sm:$0xff]
    %v105 = vld [vmem:[#allocation2 + $0x40] sm:$0xff]
    %v106 = vld [vmem:[#allocation2 + $0x48] sm:$0xff]
    %v107 = vld [vmem:[#allocation2 + $0x50] sm:$0xff]
    %v108 = vld [vmem:[#allocation2 + $0x58] sm:$0xff]
    %v109 = vld [vmem:[#allocation2 + $0x60] sm:$0xff]
    %v110 = vld [vmem:[#allocation2 + $0x68] sm:$0xff]
    %v111 = vld [vmem:[#allocation2 + $0x70] sm:$0xff]
    %v112 = vld [vmem:[#allocation2 + $0x78] sm:$0xff]
    %v113 = vld [vmem:[#allocation2 + $0x80] sm:$0xff]
    %v114 = vld [vmem:[#allocation2 + $0x88] sm:$0xff]
    %v115 = vld [vmem:[#allocation2 + $0x90] sm:$0xff]
    %v116 = vld [vmem:[#allocation2 + $0x98] sm:$0xff]
    %v117 = vld [vmem:[#allocation2 + $0xa0] sm:$0xff]
    %v118 = vld [vmem:[#allocation2 + $0xa8] sm:$0xff]
    %v119 = vld [vmem:[#allocation2 + $0xb0] sm:$0xff]
    %v120 = vld [vmem:[#allocation2 + $0xb8] sm:$0xff]
    %v121 = vld [vmem:[#allocation2 + $0xc0] sm:$0xff]
    %v122 = vld [vmem:[#allocation2 + $0xc8] sm:$0xff]
    %v123 = vld [vmem:[#allocation2 + $0xd0] sm:$0xff]
    %v124 = vld [vmem:[#allocation2 + $0xd8] sm:$0xff]
    %v125 = vld [vmem:[#allocation2 + $0xe0] sm:$0xff]
    %v126 = vld [vmem:[#allocation2 + $0xe8] sm:$0xff]
    %v127 = vld [vmem:[#allocation2 + $0xf0] sm:$0xff]
    %v128 = vld [vmem:[#allocation2 + $0xf8] sm:$0xff]
    %v161 = vunpack.c.l.b16 %v97
    %v162 = vunpack.c.h.b16 %v97
    %v163 = vunpack.c.l.b16 %v98
    %v164 = vunpack.c.h.b16 %v98
    %v165 = vunpack.c.l.b16 %v99
    %v166 = vunpack.c.h.b16 %v99
    %v167 = vunpack.c.l.b16 %v100
    %v168 = vunpack.c.h.b16 %v100
    %v169 = vunpack.c.l.b16 %v101
    %v170 = vunpack.c.h.b16 %v101
    %v171 = vunpack.c.l.b16 %v102
    %v172 = vunpack.c.h.b16 %v102
    %v173 = vunpack.c.l.b16 %v103
    %v174 = vunpack.c.h.b16 %v103
    %v175 = vunpack.c.l.b16 %v104
    %v176 = vunpack.c.h.b16 %v104
    %v177 = vunpack.c.l.b16 %v105
    %v178 = vunpack.c.h.b16 %v105
    %v179 = vunpack.c.l.b16 %v106
    %v180 = vunpack.c.h.b16 %v106
    %v181 = vunpack.c.l.b16 %v107
    %v182 = vunpack.c.h.b16 %v107
    %v183 = vunpack.c.l.b16 %v108
    %v184 = vunpack.c.h.b16 %v108
    %v185 = vunpack.c.l.b16 %v109
    %v186 = vunpack.c.h.b16 %v109
    %v187 = vunpack.c.l.b16 %v110
    %v188 = vunpack.c.h.b16 %v110
    %v189 = vunpack.c.l.b16 %v111
    %v190 = vunpack.c.h.b16 %v111
    %v191 = vunpack.c.l.b16 %v112
    %v192 = vunpack.c.h.b16 %v112
    %v193 = vunpack.c.l.b16 %v113
    %v194 = vunpack.c.h.b16 %v113
    %v195 = vunpack.c.l.b16 %v114
    %v196 = vunpack.c.h.b16 %v114
    %v197 = vunpack.c.l.b16 %v115
    %v198 = vunpack.c.h.b16 %v115
    %v199 = vunpack.c.l.b16 %v116
    %v200 = vunpack.c.h.b16 %v116
    %v201 = vunpack.c.l.b16 %v117
    %v202 = vunpack.c.h.b16 %v117
    %v203 = vunpack.c.l.b16 %v118
    %v204 = vunpack.c.h.b16 %v118
    %v205 = vunpack.c.l.b16 %v119
    %v206 = vunpack.c.h.b16 %v119
    %v207 = vunpack.c.l.b16 %v120
    %v208 = vunpack.c.h.b16 %v120
    %v209 = vunpack.c.l.b16 %v121
    %v210 = vunpack.c.h.b16 %v121
    %v211 = vunpack.c.l.b16 %v122
    %v212 = vunpack.c.h.b16 %v122
    %v213 = vunpack.c.l.b16 %v123
    %v214 = vunpack.c.h.b16 %v123
    %v215 = vunpack.c.l.b16 %v124
    %v216 = vunpack.c.h.b16 %v124
    %v217 = vunpack.c.l.b16 %v125
    %v218 = vunpack.c.h.b16 %v125
    %v219 = vunpack.c.l.b16 %v126
    %v220 = vunpack.c.h.b16 %v126
    %v221 = vunpack.c.l.b16 %v127
    %v222 = vunpack.c.h.b16 %v127
    %v223 = vunpack.c.l.b16 %v128
    %v224 = vunpack.c.h.b16 %v128
    %v225 = vpack.c.b16 %v165, %v161
    %v226 = vpack.c.b16 %v166, %v162
    %v227 = vpack.c.b16 %v167, %v163
    %v228 = vpack.c.b16 %v168, %v164
    %v229 = vpack.c.b16 %v173, %v169
    %v230 = vpack.c.b16 %v174, %v170
    %v231 = vpack.c.b16 %v175, %v171
    %v232 = vpack.c.b16 %v176, %v172
    %v233 = vpack.c.b16 %v181, %v177
    %v234 = vpack.c.b16 %v182, %v178
    %v235 = vpack.c.b16 %v183, %v179
    %v236 = vpack.c.b16 %v184, %v180
    %v237 = vpack.c.b16 %v189, %v185
    %v238 = vpack.c.b16 %v190, %v186
    %v239 = vpack.c.b16 %v191, %v187
    %v240 = vpack.c.b16 %v192, %v188
    %v241 = vpack.c.b16 %v197, %v193
    %v242 = vpack.c.b16 %v198, %v194
    %v243 = vpack.c.b16 %v199, %v195
    %v244 = vpack.c.b16 %v200, %v196
    %v245 = vpack.c.b16 %v205, %v201
    %v246 = vpack.c.b16 %v206, %v202
    %v247 = vpack.c.b16 %v207, %v203
    %v248 = vpack.c.b16 %v208, %v204
    %v249 = vpack.c.b16 %v213, %v209
    %v250 = vpack.c.b16 %v214, %v210
    %v251 = vpack.c.b16 %v215, %v211
    %v252 = vpack.c.b16 %v216, %v212
    %v253 = vpack.c.b16 %v221, %v217
    %v254 = vpack.c.b16 %v222, %v218
    %v255 = vpack.c.b16 %v223, %v219
    %v256 = vpack.c.b16 %v224, %v220
    %289 = vmatprep.subr.bf16.mxu0 %v226
    %290 = vmatpush1.bf16.msra.mxu0 %v225
    %291 = vmatprep.subr.bf16.mxu0 %v230
    %292 = vmatpush1.bf16.msra.mxu0 %v229
    %293 = vmatprep.subr.bf16.mxu0 %v234
    %294 = vmatpush1.bf16.msra.mxu0 %v233
    %295 = vmatprep.subr.bf16.mxu0 %v238
    %296 = vmatpush1.bf16.msra.mxu0 %v237
    %297 = vmatprep.subr.bf16.mxu0 %v242
    %298 = vmatpush1.bf16.msra.mxu0 %v241
    %299 = vmatprep.subr.bf16.mxu0 %v246
    %300 = vmatpush1.bf16.msra.mxu0 %v245
    %301 = vmatprep.subr.bf16.mxu0 %v250
    %302 = vmatpush1.bf16.msra.mxu0 %v249
    %303 = vmatprep.subr.bf16.mxu0 %v254
    %304 = vmatpush1.bf16.msra.mxu0 %v253
    %305 = vmatprep.subr.bf16.mxu0 0
    %306 = vmatpush1.bf16.msra.mxu0 0
    %307 = vmatprep.subr.bf16.mxu0 0
    %308 = vmatpush1.bf16.msra.mxu0 0
    %309 = vmatprep.subr.bf16.mxu0 0
    %310 = vmatpush1.bf16.msra.mxu0 0
    %311 = vmatprep.subr.bf16.mxu0 0
    %312 = vmatpush1.bf16.msra.mxu0 0
    %313 = vmatprep.subr.bf16.mxu0 0
    %314 = vmatpush1.bf16.msra.mxu0 0
    %315 = vmatprep.subr.bf16.mxu0 0
    %316 = vmatpush1.bf16.msra.mxu0 0
    %317 = vmatprep.subr.bf16.mxu0 0
    %318 = vmatpush1.bf16.msra.mxu0 0
    %319 = vmatprep.subr.bf16.mxu0 0
    %320 = vmatpush1.bf16.msra.mxu0 0
    %321 = vmatprep.mubr.bf16.mxu0 0
    %322 = vmatmul.mubr.bf16.gmra.mrb[0].mxu0 0
    %v323 = vpop.f32.mrb[0].mxu0
    %v324 = vadd.f32 0.0, %v323
    %v325 = vpop.f32.mrb[0].mxu0
    %v326 = vadd.f32 0.0, %v325
    %v327 = vpop.f32.mrb[0].mxu0
    %v328 = vpop.f32.mrb[0].mxu0
    %329 = vdwg.mxu0
    %330 = vmatprep.subr.bf16.mxu0 %v228
    %331 = vmatpush1.bf16.msra.mxu0 %v227
    %332 = vmatprep.subr.bf16.mxu0 %v232
    %333 = vmatpush1.bf16.msra.mxu0 %v231
    %334 = vmatprep.subr.bf16.mxu0 %v236
    %335 = vmatpush1.bf16.msra.mxu0 %v235
    %336 = vmatprep.subr.bf16.mxu0 %v240
    %337 = vmatpush1.bf16.msra.mxu0 %v239
    %338 = vmatprep.subr.bf16.mxu0 %v244
    %339 = vmatpush1.bf16.msra.mxu0 %v243
    %340 = vmatprep.subr.bf16.mxu0 %v248
    %341 = vmatpush1.bf16.msra.mxu0 %v247
    %342 = vmatprep.subr.bf16.mxu0 %v252
    %343 = vmatpush1.bf16.msra.mxu0 %v251
    %344 = vmatprep.subr.bf16.mxu0 %v256
    %345 = vmatpush1.bf16.msra.mxu0 %v255
    %346 = vmatprep.subr.bf16.mxu0 0
    %347 = vmatpush1.bf16.msra.mxu0 0
    %348 = vmatprep.subr.bf16.mxu0 0
    %349 = vmatpush1.bf16.msra.mxu0 0
    %350 = vmatprep.subr.bf16.mxu0 0
    %351 = vmatpush1.bf16.msra.mxu0 0
    %352 = vmatprep.subr.bf16.mxu0 0
    %353 = vmatpush1.bf16.msra.mxu0 0
    %354 = vmatprep.subr.bf16.mxu0 0
    %355 = vmatpush1.bf16.msra.mxu0 0
    %356 = vmatprep.subr.bf16.mxu0 0
    %357 = vmatpush1.bf16.msra.mxu0 0
    %358 = vmatprep.subr.bf16.mxu0 0
    %359 = vmatpush1.bf16.msra.mxu0 0
    %360 = vmatprep.subr.bf16.mxu0 0
    %361 = vmatpush1.bf16.msra.mxu0 0
    %362 = vmatprep.mubr.bf16.mxu0 0
    %363 = vmatmul.mubr.bf16.gmra.mrb[0].mxu0 0
    %v364 = vpop.f32.mrb[0].mxu0
    %v365 = vadd.f32 0.0, %v364
    %v366 = vpop.f32.mrb[0].mxu0
    %v367 = vadd.f32 0.0, %v366
    %v368 = vpop.f32.mrb[0].mxu0
    %v369 = vpop.f32.mrb[0].mxu0
    %370 = vdwg.mxu0
    %v371 = vadd.f32 %v93, %v324
    %v372 = vadd.f32 %v94, %v326
    %v373 = vadd.f32 %v95, %v365
    %v374 = vadd.f32 %v96, %v367
    %v375 = vtanh.pop %v371
    %v376 = vtanh.pop %v372
    %v377 = vtanh.pop %v373
    %v378 = vtanh.pop %v374
    %v379 = vmul.f32 %v375, 0.5
    %v380 = vadd.f32 %v379, 0.5
    %v381 = vmul.f32 %v376, 0.5
    %v382 = vadd.f32 %v381, 0.5
    %v383 = vmul.f32 %v378, 0.5
    %v384 = vadd.f32 %v383, 0.5
    %v385 = vmul.f32 %v382, 0.0
    %v386 = vmul.f32 %v380, %v377
    %v387 = vadd.f32 %v385, %v386
    %v388 = vtanh.pop %v387
    %v389 = vmul.f32 %v384, %v388
    %s390 = scalar_lea.vmem %s0, 8
    %v391 = vld [vmem:[%s390] sm:$0xff]
    %393 = vset.pattern.permute.xlu0 0
    %394 = vperm.xlu0 %393, %v391
    %v395 = vpop.permute.xlu0 %394
    %v397 = vmul.f32 %v395, %v50
    %v398 = vmul.f32 %v395, %v54
    %v399 = vmul.f32 %v395, %v58
    %v400 = vmul.f32 %v395, %v62
    %v401 = vadd.f32 %v397, %v76
    %v402 = vadd.f32 %v398, %v80
    %v403 = vadd.f32 %v399, %v84
    %v404 = vadd.f32 %v400, %v88
    %v405 = vpack.c.bf16 %v389, %v389
    %406 = vmatprep.subr.bf16.mxu0 %v226
    %407 = vmatpush1.bf16.msra.mxu0 %v225
    %408 = vmatprep.subr.bf16.mxu0 %v230
    %409 = vmatpush1.bf16.msra.mxu0 %v229
    %410 = vmatprep.subr.bf16.mxu0 %v234
    %411 = vmatpush1.bf16.msra.mxu0 %v233
    %412 = vmatprep.subr.bf16.mxu0 %v238
    %413 = vmatpush1.bf16.msra.mxu0 %v237
    %414 = vmatprep.subr.bf16.mxu0 %v242
    %415 = vmatpush1.bf16.msra.mxu0 %v241
    %416 = vmatprep.subr.bf16.mxu0 %v246
    %417 = vmatpush1.bf16.msra.mxu0 %v245
    %418 = vmatprep.subr.bf16.mxu0 %v250
    %419 = vmatpush1.bf16.msra.mxu0 %v249
    %420 = vmatprep.subr.bf16.mxu0 %v254
    %421 = vmatpush1.bf16.msra.mxu0 %v253
    %422 = vmatprep.subr.bf16.mxu0 0
    %423 = vmatpush1.bf16.msra.mxu0 0
    %424 = vmatprep.subr.bf16.mxu0 0
    %425 = vmatpush1.bf16.msra.mxu0 0
    %426 = vmatprep.subr.bf16.mxu0 0
    %427 = vmatpush1.bf16.msra.mxu0 0
    %428 = vmatprep.subr.bf16.mxu0 0
    %429 = vmatpush1.bf16.msra.mxu0 0
    %430 = vmatprep.subr.bf16.mxu0 0
    %431 = vmatpush1.bf16.msra.mxu0 0
    %432 = vmatprep.subr.bf16.mxu0 0
    %433 = vmatpush1.bf16.msra.mxu0 0
    %434 = vmatprep.subr.bf16.mxu0 0
    %435 = vmatpush1.bf16.msra.mxu0 0
    %436 = vmatprep.subr.bf16.mxu0 0
    %437 = vmatpush1.bf16.msra.mxu0 0
    %438 = vmatprep.mubr.bf16.mxu0 0
    %439 = vmatmul.mubr.bf16.gmra.mrb[0].mxu0 %v405
    %v440 = vpop.f32.mrb[0].mxu0
    %v441 = vadd.f32 0.0, %v440
    %v442 = vpop.f32.mrb[0].mxu0
    %v443 = vadd.f32 0.0, %v442
    %v444 = vpop.f32.mrb[0].mxu0
    %v445 = vpop.f32.mrb[0].mxu0
    %446 = vdwg.mxu0
    %447 = vmatprep.subr.bf16.mxu0 %v228
    %448 = vmatpush1.bf16.msra.mxu0 %v227
    %449 = vmatprep.subr.bf16.mxu0 %v232
    %450 = vmatpush1.bf16.msra.mxu0 %v231
    %451 = vmatprep.subr.bf16.mxu0 %v236
    %452 = vmatpush1.bf16.msra.mxu0 %v235
    %453 = vmatprep.subr.bf16.mxu0 %v240
    %454 = vmatpush1.bf16.msra.mxu0 %v239
    %455 = vmatprep.subr.bf16.mxu0 %v244
    %456 = vmatpush1.bf16.msra.mxu0 %v243
    %457 = vmatprep.subr.bf16.mxu0 %v248
    %458 = vmatpush1.bf16.msra.mxu0 %v247
    %459 = vmatprep.subr.bf16.mxu0 %v252
    %460 = vmatpush1.bf16.msra.mxu0 %v251
    %461 = vmatprep.subr.bf16.mxu0 %v256
    %462 = vmatpush1.bf16.msra.mxu0 %v255
    %463 = vmatprep.subr.bf16.mxu0 0
    %464 = vmatpush1.bf16.msra.mxu0 0
    %465 = vmatprep.subr.bf16.mxu0 0
    %466 = vmatpush1.bf16.msra.mxu0 0
    %467 = vmatprep.subr.bf16.mxu0 0
    %468 = vmatpush1.bf16.msra.mxu0 0
    %469 = vmatprep.subr.bf16.mxu0 0
    %470 = vmatpush1.bf16.msra.mxu0 0
    %471 = vmatprep.subr.bf16.mxu0 0
    %472 = vmatpush1.bf16.msra.mxu0 0
    %473 = vmatprep.subr.bf16.mxu0 0
    %474 = vmatpush1.bf16.msra.mxu0 0
    %475 = vmatprep.subr.bf16.mxu0 0
    %476 = vmatpush1.bf16.msra.mxu0 0
    %477 = vmatprep.subr.bf16.mxu0 0
    %478 = vmatpush1.bf16.msra.mxu0 0
    %479 = vmatprep.mubr.bf16.mxu0 0
    %480 = vmatmul.mubr.bf16.gmra.mrb[0].mxu0 %v405
    %v481 = vpop.f32.mrb[0].mxu0
    %v482 = vadd.f32 0.0, %v481
    %v483 = vpop.f32.mrb[0].mxu0
    %v484 = vadd.f32 0.0, %v483
    %v485 = vpop.f32.mrb[0].mxu0
    %v486 = vpop.f32.mrb[0].mxu0
    %487 = vdwg.mxu0
    %v488 = vadd.f32 %v401, %v441
    %v489 = vadd.f32 %v402, %v443
    %v490 = vadd.f32 %v403, %v482
    %v491 = vadd.f32 %v404, %v484
    %v492 = vtanh.pop %v488
    %v493 = vtanh.pop %v489
    %v494 = vtanh.pop %v490
    %v495 = vtanh.pop %v491
    %v496 = vmul.f32 %v492, 0.5
    %v497 = vadd.f32 %v496, 0.5
    %v498 = vmul.f32 %v493, 0.5
    %v499 = vadd.f32 %v498, 0.5
    %v500 = vmul.f32 %v495, 0.5
    %v501 = vadd.f32 %v500, 0.5
    %v502 = vmul.f32 %v499, %v387
    %v503 = vmul.f32 %v497, %v494
    %v504 = vadd.f32 %v502, %v503
    %v505 = vtanh.pop %v504
    %v506 = vmul.f32 %v501, %v505
    %s507 = scalar_lea.vmem %s0, 16
    %v508 = vld [vmem:[%s507] sm:$0xff]
    %510 = vset.pattern.permute.xlu0 0
    %511 = vperm.xlu0 %510, %v508
    %v512 = vpop.permute.xlu0 %511
    %v514 = vmul.f32 %v512, %v50
    %v515 = vmul.f32 %v512, %v54
    %v516 = vmul.f32 %v512, %v58
    %v517 = vmul.f32 %v512, %v62
    %v518 = vadd.f32 %v514, %v76
    %v519 = vadd.f32 %v515, %v80
    %v520 = vadd.f32 %v516, %v84
    %v521 = vadd.f32 %v517, %v88
    %v522 = vpack.c.bf16 %v506, %v506
    %523 = vmatprep.subr.bf16.mxu0 %v226
    %524 = vmatpush1.bf16.msra.mxu0 %v225
    %525 = vmatprep.subr.bf16.mxu0 %v230
    %526 = vmatpush1.bf16.msra.mxu0 %v229
    %527 = vmatprep.subr.bf16.mxu0 %v234
    %528 = vmatpush1.bf16.msra.mxu0 %v233
    %529 = vmatprep.subr.bf16.mxu0 %v238
    %530 = vmatpush1.bf16.msra.mxu0 %v237
    %531 = vmatprep.subr.bf16.mxu0 %v242
    %532 = vmatpush1.bf16.msra.mxu0 %v241
    %533 = vmatprep.subr.bf16.mxu0 %v246
    %534 = vmatpush1.bf16.msra.mxu0 %v245
    %535 = vmatprep.subr.bf16.mxu0 %v250
    %536 = vmatpush1.bf16.msra.mxu0 %v249
    %537 = vmatprep.subr.bf16.mxu0 %v254
    %538 = vmatpush1.bf16.msra.mxu0 %v253
    %539 = vmatprep.subr.bf16.mxu0 0
    %540 = vmatpush1.bf16.msra.mxu0 0
    %541 = vmatprep.subr.bf16.mxu0 0
    %542 = vmatpush1.bf16.msra.mxu0 0
    %543 = vmatprep.subr.bf16.mxu0 0
    %544 = vmatpush1.bf16.msra.mxu0 0
    %545 = vmatprep.subr.bf16.mxu0 0
    %546 = vmatpush1.bf16.msra.mxu0 0
    %547 = vmatprep.subr.bf16.mxu0 0
    %548 = vmatpush1.bf16.msra.mxu0 0
    %549 = vmatprep.subr.bf16.mxu0 0
    %550 = vmatpush1.bf16.msra.mxu0 0
    %551 = vmatprep.subr.bf16.mxu0 0
    %552 = vmatpush1.bf16.msra.mxu0 0
    %553 = vmatprep.subr.bf16.mxu0 0
    %554 = vmatpush1.bf16.msra.mxu0 0
    %555 = vmatprep.mubr.bf16.mxu0 0
    %556 = vmatmul.mubr.bf16.gmra.mrb[0].mxu0 %v522
    %v557 = vpop.f32.mrb[0].mxu0
    %v558 = vadd.f32 0.0, %v557
    %v559 = vpop.f32.mrb[0].mxu0
    %v560 = vadd.f32 0.0, %v559
    %v561 = vpop.f32.mrb[0].mxu0
    %v562 = vpop.f32.mrb[0].mxu0
    %563 = vdwg.mxu0
    %564 = vmatprep.subr.bf16.mxu0 %v228
    %565 = vmatpush1.bf16.msra.mxu0 %v227
    %566 = vmatprep.subr.bf16.mxu0 %v232
    %567 = vmatpush1.bf16.msra.mxu0 %v231
    %568 = vmatprep.subr.bf16.mxu0 %v236
    %569 = vmatpush1.bf16.msra.mxu0 %v235
    %570 = vmatprep.subr.bf16.mxu0 %v240
    %571 = vmatpush1.bf16.msra.mxu0 %v239
    %572 = vmatprep.subr.bf16.mxu0 %v244
    %573 = vmatpush1.bf16.msra.mxu0 %v243
    %574 = vmatprep.subr.bf16.mxu0 %v248
    %575 = vmatpush1.bf16.msra.mxu0 %v247
    %576 = vmatprep.subr.bf16.mxu0 %v252
    %577 = vmatpush1.bf16.msra.mxu0 %v251
    %578 = vmatprep.subr.bf16.mxu0 %v256
    %579 = vmatpush1.bf16.msra.mxu0 %v255
    %580 = vmatprep.subr.bf16.mxu0 0
    %581 = vmatpush1.bf16.msra.mxu0 0
    %582 = vmatprep.subr.bf16.mxu0 0
    %583 = vmatpush1.bf16.msra.mxu0 0
    %584 = vmatprep.subr.bf16.mxu0 0
    %585 = vmatpush1.bf16.msra.mxu0 0
    %586 = vmatprep.subr.bf16.mxu0 0
    %587 = vmatpush1.bf16.msra.mxu0 0
    %588 = vmatprep.subr.bf16.mxu0 0
    %589 = vmatpush1.bf16.msra.mxu0 0
    %590 = vmatprep.subr.bf16.mxu0 0
    %591 = vmatpush1.bf16.msra.mxu0 0
    %592 = vmatprep.subr.bf16.mxu0 0
    %593 = vmatpush1.bf16.msra.mxu0 0
    %594 = vmatprep.subr.bf16.mxu0 0
    %595 = vmatpush1.bf16.msra.mxu0 0
    %596 = vmatprep.mubr.bf16.mxu0 0
    %597 = vmatmul.mubr.bf16.gmra.mrb[0].mxu0 %v522
    %v598 = vpop.f32.mrb[0].mxu0
    %v599 = vadd.f32 0.0, %v598
    %v600 = vpop.f32.mrb[0].mxu0
    %v601 = vadd.f32 0.0, %v600
    %v602 = vpop.f32.mrb[0].mxu0
    %v603 = vpop.f32.mrb[0].mxu0
    %604 = vdwg.mxu0
    %v605 = vadd.f32 %v518, %v558
    %v606 = vadd.f32 %v519, %v560
    %v607 = vadd.f32 %v520, %v599
    %v608 = vadd.f32 %v521, %v601
    %v609 = vtanh.pop %v605
    %v610 = vtanh.pop %v606
    %v611 = vtanh.pop %v607
    %v612 = vtanh.pop %v608
    %v613 = vmul.f32 %v609, 0.5
    %v614 = vadd.f32 %v613, 0.5
    %v615 = vmul.f32 %v610, 0.5
    %v616 = vadd.f32 %v615, 0.5
    %v617 = vmul.f32 %v612, 0.5
    %v618 = vadd.f32 %v617, 0.5
    %v619 = vmul.f32 %v616, %v504
    %v620 = vmul.f32 %v614, %v611
    %v621 = vadd.f32 %v619, %v620
    %v622 = vtanh.pop %v621
    %v623 = vmul.f32 %v618, %v622
    %s624 = scalar_lea.vmem %s0, 24
    %v625 = vld [vmem:[%s624] sm:$0xff]
    %627 = vset.pattern.permute.xlu0 0
    %628 = vperm.xlu0 %627, %v625
    %v629 = vpop.permute.xlu0 %628
    %v631 = vmul.f32 %v629, %v50
    %v632 = vmul.f32 %v629, %v54
    %v633 = vmul.f32 %v629, %v58
    %v634 = vmul.f32 %v629, %v62
    %v635 = vadd.f32 %v631, %v76
    %v636 = vadd.f32 %v632, %v80
    %v637 = vadd.f32 %v633, %v84
    %v638 = vadd.f32 %v634, %v88
    %v639 = vpack.c.bf16 %v623, %v623
    %640 = vmatprep.subr.bf16.mxu0 %v226
    %641 = vmatpush1.bf16.msra.mxu0 %v225
    %642 = vmatprep.subr.bf16.mxu0 %v230
    %643 = vmatpush1.bf16.msra.mxu0 %v229
    %644 = vmatprep.subr.bf16.mxu0 %v234
    %645 = vmatpush1.bf16.msra.mxu0 %v233
    %646 = vmatprep.subr.bf16.mxu0 %v238
    %647 = vmatpush1.bf16.msra.mxu0 %v237
    %648 = vmatprep.subr.bf16.mxu0 %v242
    %649 = vmatpush1.bf16.msra.mxu0 %v241
    %650 = vmatprep.subr.bf16.mxu0 %v246
    %651 = vmatpush1.bf16.msra.mxu0 %v245
    %652 = vmatprep.subr.bf16.mxu0 %v250
    %653 = vmatpush1.bf16.msra.mxu0 %v249
    %654 = vmatprep.subr.bf16.mxu0 %v254
    %655 = vmatpush1.bf16.msra.mxu0 %v253
    %656 = vmatprep.subr.bf16.mxu0 0
    %657 = vmatpush1.bf16.msra.mxu0 0
    %658 = vmatprep.subr.bf16.mxu0 0
    %659 = vmatpush1.bf16.msra.mxu0 0
    %660 = vmatprep.subr.bf16.mxu0 0
    %661 = vmatpush1.bf16.msra.mxu0 0
    %662 = vmatprep.subr.bf16.mxu0 0
    %663 = vmatpush1.bf16.msra.mxu0 0
    %664 = vmatprep.subr.bf16.mxu0 0
    %665 = vmatpush1.bf16.msra.mxu0 0
    %666 = vmatprep.subr.bf16.mxu0 0
    %667 = vmatpush1.bf16.msra.mxu0 0
    %668 = vmatprep.subr.bf16.mxu0 0
    %669 = vmatpush1.bf16.msra.mxu0 0
    %670 = vmatprep.subr.bf16.mxu0 0
    %671 = vmatpush1.bf16.msra.mxu0 0
    %672 = vmatprep.mubr.bf16.mxu0 0
    %673 = vmatmul.mubr.bf16.gmra.mrb[0].mxu0 %v639
    %v674 = vpop.f32.mrb[0].mxu0
    %v675 = vadd.f32 0.0, %v674
    %v676 = vpop.f32.mrb[0].mxu0
    %v677 = vadd.f32 0.0, %v676
    %v678 = vpop.f32.mrb[0].mxu0
    %v679 = vpop.f32.mrb[0].mxu0
    %680 = vdwg.mxu0
    %681 = vmatprep.subr.bf16.mxu0 %v228
    %682 = vmatpush1.bf16.msra.mxu0 %v227
    %683 = vmatprep.subr.bf16.mxu0 %v232
    %684 = vmatpush1.bf16.msra.mxu0 %v231
    %685 = vmatprep.subr.bf16.mxu0 %v236
    %686 = vmatpush1.bf16.msra.mxu0 %v235
    %687 = vmatprep.subr.bf16.mxu0 %v240
    %688 = vmatpush1.bf16.msra.mxu0 %v239
    %689 = vmatprep.subr.bf16.mxu0 %v244
    %690 = vmatpush1.bf16.msra.mxu0 %v243
    %691 = vmatprep.subr.bf16.mxu0 %v248
    %692 = vmatpush1.bf16.msra.mxu0 %v247
    %693 = vmatprep.subr.bf16.mxu0 %v252
    %694 = vmatpush1.bf16.msra.mxu0 %v251
    %695 = vmatprep.subr.bf16.mxu0 %v256
    %696 = vmatpush1.bf16.msra.mxu0 %v255
    %697 = vmatprep.subr.bf16.mxu0 0
    %698 = vmatpush1.bf16.msra.mxu0 0
    %699 = vmatprep.subr.bf16.mxu0 0
    %700 = vmatpush1.bf16.msra.mxu0 0
    %701 = vmatprep.subr.bf16.mxu0 0
    %702 = vmatpush1.bf16.msra.mxu0 0
    %703 = vmatprep.subr.bf16.mxu0 0
    %704 = vmatpush1.bf16.msra.mxu0 0
    %705 = vmatprep.subr.bf16.mxu0 0
    %706 = vmatpush1.bf16.msra.mxu0 0
    %707 = vmatprep.subr.bf16.mxu0 0
    %708 = vmatpush1.bf16.msra.mxu0 0
    %709 = vmatprep.subr.bf16.mxu0 0
    %710 = vmatpush1.bf16.msra.mxu0 0
    %711 = vmatprep.subr.bf16.mxu0 0
    %712 = vmatpush1.bf16.msra.mxu0 0
    %713 = vmatprep.mubr.bf16.mxu0 0
    %714 = vmatmul.mubr.bf16.gmra.mrb[0].mxu0 %v639
    %v715 = vpop.f32.mrb[0].mxu0
    %v716 = vadd.f32 0.0, %v715
    %v717 = vpop.f32.mrb[0].mxu0
    %v718 = vadd.f32 0.0, %v717
    %v719 = vpop.f32.mrb[0].mxu0
    %v720 = vpop.f32.mrb[0].mxu0
    %721 = vdwg.mxu0
    %v722 = vadd.f32 %v635, %v675
    %v723 = vadd.f32 %v636, %v677
    %v724 = vadd.f32 %v637, %v716
    %v725 = vadd.f32 %v638, %v718
    %v726 = vtanh.pop %v722
    %v727 = vtanh.pop %v723
    %v728 = vtanh.pop %v724
    %v729 = vtanh.pop %v725
    %v730 = vmul.f32 %v726, 0.5
    %v731 = vadd.f32 %v730, 0.5
    %v732 = vmul.f32 %v727, 0.5
    %v733 = vadd.f32 %v732, 0.5
    %v734 = vmul.f32 %v729, 0.5
    %v735 = vadd.f32 %v734, 0.5
    %v736 = vmul.f32 %v733, %v621
    %v737 = vmul.f32 %v731, %v728
    %v738 = vadd.f32 %v736, %v737
    %v739 = vtanh.pop %v738
    %v740 = vmul.f32 %v735, %v739
    %s741 = scalar_lea.vmem %s0, 32
    %v742 = vld [vmem:[%s741] sm:$0xff]
    %744 = vset.pattern.permute.xlu0 0
    %745 = vperm.xlu0 %744, %v742
    %v746 = vpop.permute.xlu0 %745
    %v748 = vmul.f32 %v746, %v50
    %v749 = vmul.f32 %v746, %v54
    %v750 = vmul.f32 %v746, %v58
    %v751 = vmul.f32 %v746, %v62
    %v752 = vadd.f32 %v748, %v76
    %v753 = vadd.f32 %v749, %v80
    %v754 = vadd.f32 %v750, %v84
    %v755 = vadd.f32 %v751, %v88
    %v756 = vpack.c.bf16 %v740, %v740
    %757 = vmatprep.subr.bf16.mxu0 %v226
    %758 = vmatpush1.bf16.msra.mxu0 %v225
    %759 = vmatprep.subr.bf16.mxu0 %v230
    %760 = vmatpush1.bf16.msra.mxu0 %v229
    %761 = vmatprep.subr.bf16.mxu0 %v234
    %762 = vmatpush1.bf16.msra.mxu0 %v233
    %763 = vmatprep.subr.bf16.mxu0 %v238
    %764 = vmatpush1.bf16.msra.mxu0 %v237
    %765 = vmatprep.subr.bf16.mxu0 %v242
    %766 = vmatpush1.bf16.msra.mxu0 %v241
    %767 = vmatprep.subr.bf16.mxu0 %v246
    %768 = vmatpush1.bf16.msra.mxu0 %v245
    %769 = vmatprep.subr.bf16.mxu0 %v250
    %770 = vmatpush1.bf16.msra.mxu0 %v249
    %771 = vmatprep.subr.bf16.mxu0 %v254
    %772 = vmatpush1.bf16.msra.mxu0 %v253
    %773 = vmatprep.subr.bf16.mxu0 0
    %774 = vmatpush1.bf16.msra.mxu0 0
    %775 = vmatprep.subr.bf16.mxu0 0
    %776 = vmatpush1.bf16.msra.mxu0 0
    %777 = vmatprep.subr.bf16.mxu0 0
    %778 = vmatpush1.bf16.msra.mxu0 0
    %779 = vmatprep.subr.bf16.mxu0 0
    %780 = vmatpush1.bf16.msra.mxu0 0
    %781 = vmatprep.subr.bf16.mxu0 0
    %782 = vmatpush1.bf16.msra.mxu0 0
    %783 = vmatprep.subr.bf16.mxu0 0
    %784 = vmatpush1.bf16.msra.mxu0 0
    %785 = vmatprep.subr.bf16.mxu0 0
    %786 = vmatpush1.bf16.msra.mxu0 0
    %787 = vmatprep.subr.bf16.mxu0 0
    %788 = vmatpush1.bf16.msra.mxu0 0
    %789 = vmatprep.mubr.bf16.mxu0 0
    %790 = vmatmul.mubr.bf16.gmra.mrb[0].mxu0 %v756
    %v791 = vpop.f32.mrb[0].mxu0
    %v792 = vadd.f32 0.0, %v791
    %v793 = vpop.f32.mrb[0].mxu0
    %v794 = vadd.f32 0.0, %v793
    %v795 = vpop.f32.mrb[0].mxu0
    %v796 = vpop.f32.mrb[0].mxu0
    %797 = vdwg.mxu0
    %798 = vmatprep.subr.bf16.mxu0 %v228
    %799 = vmatpush1.bf16.msra.mxu0 %v227
    %800 = vmatprep.subr.bf16.mxu0 %v232
    %801 = vmatpush1.bf16.msra.mxu0 %v231
    %802 = vmatprep.subr.bf16.mxu0 %v236
    %803 = vmatpush1.bf16.msra.mxu0 %v235
    %804 = vmatprep.subr.bf16.mxu0 %v240
    %805 = vmatpush1.bf16.msra.mxu0 %v239
    %806 = vmatprep.subr.bf16.mxu0 %v244
    %807 = vmatpush1.bf16.msra.mxu0 %v243
    %808 = vmatprep.subr.bf16.mxu0 %v248
    %809 = vmatpush1.bf16.msra.mxu0 %v247
    %810 = vmatprep.subr.bf16.mxu0 %v252
    %811 = vmatpush1.bf16.msra.mxu0 %v251
    %812 = vmatprep.subr.bf16.mxu0 %v256
    %813 = vmatpush1.bf16.msra.mxu0 %v255
    %814 = vmatprep.subr.bf16.mxu0 0
    %815 = vmatpush1.bf16.msra.mxu0 0
    %816 = vmatprep.subr.bf16.mxu0 0
    %817 = vmatpush1.bf16.msra.mxu0 0
    %818 = vmatprep.subr.bf16.mxu0 0
    %819 = vmatpush1.bf16.msra.mxu0 0
    %820 = vmatprep.subr.bf16.mxu0 0
    %821 = vmatpush1.bf16.msra.mxu0 0
    %822 = vmatprep.subr.bf16.mxu0 0
    %823 = vmatpush1.bf16.msra.mxu0 0
    %824 = vmatprep.subr.bf16.mxu0 0
    %825 = vmatpush1.bf16.msra.mxu0 0
    %826 = vmatprep.subr.bf16.mxu0 0
    %827 = vmatpush1.bf16.msra.mxu0 0
    %828 = vmatprep.subr.bf16.mxu0 0
    %829 = vmatpush1.bf16.msra.mxu0 0
    %830 = vmatprep.mubr.bf16.mxu0 0
    %831 = vmatmul.mubr.bf16.gmra.mrb[0].mxu0 %v756
    %v832 = vpop.f32.mrb[0].mxu0
    %v833 = vadd.f32 0.0, %v832
    %v834 = vpop.f32.mrb[0].mxu0
    %v835 = vadd.f32 0.0, %v834
    %v836 = vpop.f32.mrb[0].mxu0
    %v837 = vpop.f32.mrb[0].mxu0
    %838 = vdwg.mxu0
    %v839 = vadd.f32 %v752, %v792
    %v840 = vadd.f32 %v753, %v794
    %v841 = vadd.f32 %v754, %v833
    %v842 = vadd.f32 %v755, %v835
    %v843 = vtanh.pop %v839
    %v844 = vtanh.pop %v840
    %v845 = vtanh.pop %v841
    %v846 = vtanh.pop %v842
    %v847 = vmul.f32 %v843, 0.5
    %v848 = vadd.f32 %v847, 0.5
    %v849 = vmul.f32 %v844, 0.5
    %v850 = vadd.f32 %v849, 0.5
    %v851 = vmul.f32 %v846, 0.5
    %v852 = vadd.f32 %v851, 0.5
    %v853 = vmul.f32 %v850, %v738
    %v854 = vmul.f32 %v848, %v845
    %v855 = vadd.f32 %v853, %v854
    %v856 = vtanh.pop %v855
    %v857 = vmul.f32 %v852, %v856
    %s858 = scalar_lea.vmem %s0, 40
    %v859 = vld [vmem:[%s858] sm:$0xff]
    %861 = vset.pattern.permute.xlu0 0
    %862 = vperm.xlu0 %861, %v859
    %v863 = vpop.permute.xlu0 %862
    %v865 = vmul.f32 %v863, %v50
    %v866 = vmul.f32 %v863, %v54
    %v867 = vmul.f32 %v863, %v58
    %v868 = vmul.f32 %v863, %v62
    %v869 = vadd.f32 %v865, %v76
    %v870 = vadd.f32 %v866, %v80
    %v871 = vadd.f32 %v867, %v84
    %v872 = vadd.f32 %v868, %v88
    %v873 = vpack.c.bf16 %v857, %v857
    %874 = vmatprep.subr.bf16.mxu0 %v226
    %875 = vmatpush1.bf16.msra.mxu0 %v225
    %876 = vmatprep.subr.bf16.mxu0 %v230
    %877 = vmatpush1.bf16.msra.mxu0 %v229
    %878 = vmatprep.subr.bf16.mxu0 %v234
    %879 = vmatpush1.bf16.msra.mxu0 %v233
    %880 = vmatprep.subr.bf16.mxu0 %v238
    %881 = vmatpush1.bf16.msra.mxu0 %v237
    %882 = vmatprep.subr.bf16.mxu0 %v242
    %883 = vmatpush1.bf16.msra.mxu0 %v241
    %884 = vmatprep.subr.bf16.mxu0 %v246
    %885 = vmatpush1.bf16.msra.mxu0 %v245
    %886 = vmatprep.subr.bf16.mxu0 %v250
    %887 = vmatpush1.bf16.msra.mxu0 %v249
    %888 = vmatprep.subr.bf16.mxu0 %v254
    %889 = vmatpush1.bf16.msra.mxu0 %v253
    %890 = vmatprep.subr.bf16.mxu0 0
    %891 = vmatpush1.bf16.msra.mxu0 0
    %892 = vmatprep.subr.bf16.mxu0 0
    %893 = vmatpush1.bf16.msra.mxu0 0
    %894 = vmatprep.subr.bf16.mxu0 0
    %895 = vmatpush1.bf16.msra.mxu0 0
    %896 = vmatprep.subr.bf16.mxu0 0
    %897 = vmatpush1.bf16.msra.mxu0 0
    %898 = vmatprep.subr.bf16.mxu0 0
    %899 = vmatpush1.bf16.msra.mxu0 0
    %900 = vmatprep.subr.bf16.mxu0 0
    %901 = vmatpush1.bf16.msra.mxu0 0
    %902 = vmatprep.subr.bf16.mxu0 0
    %903 = vmatpush1.bf16.msra.mxu0 0
    %904 = vmatprep.subr.bf16.mxu0 0
    %905 = vmatpush1.bf16.msra.mxu0 0
    %906 = vmatprep.mubr.bf16.mxu0 0
    %907 = vmatmul.mubr.bf16.gmra.mrb[0].mxu0 %v873
    %v908 = vpop.f32.mrb[0].mxu0
    %v909 = vadd.f32 0.0, %v908
    %v910 = vpop.f32.mrb[0].mxu0
    %v911 = vadd.f32 0.0, %v910
    %v912 = vpop.f32.mrb[0].mxu0
    %v913 = vpop.f32.mrb[0].mxu0
    %914 = vdwg.mxu0
    %915 = vmatprep.subr.bf16.mxu0 %v228
    %916 = vmatpush1.bf16.msra.mxu0 %v227
    %917 = vmatprep.subr.bf16.mxu0 %v232
    %918 = vmatpush1.bf16.msra.mxu0 %v231
    %919 = vmatprep.subr.bf16.mxu0 %v236
    %920 = vmatpush1.bf16.msra.mxu0 %v235
    %921 = vmatprep.subr.bf16.mxu0 %v240
    %922 = vmatpush1.bf16.msra.mxu0 %v239
    %923 = vmatprep.subr.bf16.mxu0 %v244
    %924 = vmatpush1.bf16.msra.mxu0 %v243
    %925 = vmatprep.subr.bf16.mxu0 %v248
    %926 = vmatpush1.bf16.msra.mxu0 %v247
    %927 = vmatprep.subr.bf16.mxu0 %v252
    %928 = vmatpush1.bf16.msra.mxu0 %v251
    %929 = vmatprep.subr.bf16.mxu0 %v256
    %930 = vmatpush1.bf16.msra.mxu0 %v255
    %931 = vmatprep.subr.bf16.mxu0 0
    %932 = vmatpush1.bf16.msra.mxu0 0
    %933 = vmatprep.subr.bf16.mxu0 0
    %934 = vmatpush1.bf16.msra.mxu0 0
    %935 = vmatprep.subr.bf16.mxu0 0
    %936 = vmatpush1.bf16.msra.mxu0 0
    %937 = vmatprep.subr.bf16.mxu0 0
    %938 = vmatpush1.bf16.msra.mxu0 0
    %939 = vmatprep.subr.bf16.mxu0 0
    %940 = vmatpush1.bf16.msra.mxu0 0
    %941 = vmatprep.subr.bf16.mxu0 0
    %942 = vmatpush1.bf16.msra.mxu0 0
    %943 = vmatprep.subr.bf16.mxu0 0
    %944 = vmatpush1.bf16.msra.mxu0 0
    %945 = vmatprep.subr.bf16.mxu0 0
    %946 = vmatpush1.bf16.msra.mxu0 0
    %947 = vmatprep.mubr.bf16.mxu0 0
    %948 = vmatmul.mubr.bf16.gmra.mrb[0].mxu0 %v873
    %v949 = vpop.f32.mrb[0].mxu0
    %v950 = vadd.f32 0.0, %v949
    %v951 = vpop.f32.mrb[0].mxu0
    %v952 = vadd.f32 0.0, %v951
    %v953 = vpop.f32.mrb[0].mxu0
    %v954 = vpop.f32.mrb[0].mxu0
    %955 = vdwg.mxu0
    %v956 = vadd.f32 %v869, %v909
    %v957 = vadd.f32 %v870, %v911
    %v958 = vadd.f32 %v871, %v950
    %v959 = vadd.f32 %v872, %v952
    %v960 = vtanh.pop %v956
    %v961 = vtanh.pop %v957
    %v962 = vtanh.pop %v958
    %v963 = vtanh.pop %v959
    %v964 = vmul.f32 %v960, 0.5
    %v965 = vadd.f32 %v964, 0.5
    %v966 = vmul.f32 %v961, 0.5
    %v967 = vadd.f32 %v966, 0.5
    %v968 = vmul.f32 %v963, 0.5
    %v969 = vadd.f32 %v968, 0.5
    %v970 = vmul.f32 %v967, %v855
    %v971 = vmul.f32 %v965, %v962
    %v972 = vadd.f32 %v970, %v971
    %v973 = vtanh.pop %v972
    %v974 = vmul.f32 %v969, %v973
    %s975 = scalar_lea.vmem %s0, 48
    %v976 = vld [vmem:[%s975] sm:$0xff]
    %978 = vset.pattern.permute.xlu0 0
    %979 = vperm.xlu0 %978, %v976
    %v980 = vpop.permute.xlu0 %979
    %v982 = vmul.f32 %v980, %v50
    %v983 = vmul.f32 %v980, %v54
    %v984 = vmul.f32 %v980, %v58
    %v985 = vmul.f32 %v980, %v62
    %v986 = vadd.f32 %v982, %v76
    %v987 = vadd.f32 %v983, %v80
    %v988 = vadd.f32 %v984, %v84
    %v989 = vadd.f32 %v985, %v88
    %v990 = vpack.c.bf16 %v974, %v974
    %991 = vmatprep.subr.bf16.mxu0 %v226
    %992 = vmatpush1.bf16.msra.mxu0 %v225
    %993 = vmatprep.subr.bf16.mxu0 %v230
    %994 = vmatpush1.bf16.msra.mxu0 %v229
    %995 = vmatprep.subr.bf16.mxu0 %v234
    %996 = vmatpush1.bf16.msra.mxu0 %v233
    %997 = vmatprep.subr.bf16.mxu0 %v238
    %998 = vmatpush1.bf16.msra.mxu0 %v237
    %999 = vmatprep.subr.bf16.mxu0 %v242
    %1000 = vmatpush1.bf16.msra.mxu0 %v241
    %1001 = vmatprep.subr.bf16.mxu0 %v246
    %1002 = vmatpush1.bf16.msra.mxu0 %v245
    %1003 = vmatprep.subr.bf16.mxu0 %v250
    %1004 = vmatpush1.bf16.msra.mxu0 %v249
    %1005 = vmatprep.subr.bf16.mxu0 %v254
    %1006 = vmatpush1.bf16.msra.mxu0 %v253
    %1007 = vmatprep.subr.bf16.mxu0 0
    %1008 = vmatpush1.bf16.msra.mxu0 0
    %1009 = vmatprep.subr.bf16.mxu0 0
    %1010 = vmatpush1.bf16.msra.mxu0 0
    %1011 = vmatprep.subr.bf16.mxu0 0
    %1012 = vmatpush1.bf16.msra.mxu0 0
    %1013 = vmatprep.subr.bf16.mxu0 0
    %1014 = vmatpush1.bf16.msra.mxu0 0
    %1015 = vmatprep.subr.bf16.mxu0 0
    %1016 = vmatpush1.bf16.msra.mxu0 0
    %1017 = vmatprep.subr.bf16.mxu0 0
    %1018 = vmatpush1.bf16.msra.mxu0 0
    %1019 = vmatprep.subr.bf16.mxu0 0
    %1020 = vmatpush1.bf16.msra.mxu0 0
    %1021 = vmatprep.subr.bf16.mxu0 0
    %1022 = vmatpush1.bf16.msra.mxu0 0
    %1023 = vmatprep.mubr.bf16.mxu0 0
    %1024 = vmatmul.mubr.bf16.gmra.mrb[0].mxu0 %v990
    %v1025 = vpop.f32.mrb[0].mxu0
    %v1026 = vadd.f32 0.0, %v1025
    %v1027 = vpop.f32.mrb[0].mxu0
    %v1028 = vadd.f32 0.0, %v1027
    %v1029 = vpop.f32.mrb[0].mxu0
    %v1030 = vpop.f32.mrb[0].mxu0
    %1031 = vdwg.mxu0
    %1032 = vmatprep.subr.bf16.mxu0 %v228
    %1033 = vmatpush1.bf16.msra.mxu0 %v227
    %1034 = vmatprep.subr.bf16.mxu0 %v232
    %1035 = vmatpush1.bf16.msra.mxu0 %v231
    %1036 = vmatprep.subr.bf16.mxu0 %v236
    %1037 = vmatpush1.bf16.msra.mxu0 %v235
    %1038 = vmatprep.subr.bf16.mxu0 %v240
    %1039 = vmatpush1.bf16.msra.mxu0 %v239
    %1040 = vmatprep.subr.bf16.mxu0 %v244
    %1041 = vmatpush1.bf16.msra.mxu0 %v243
    %1042 = vmatprep.subr.bf16.mxu0 %v248
    %1043 = vmatpush1.bf16.msra.mxu0 %v247
    %1044 = vmatprep.subr.bf16.mxu0 %v252
    %1045 = vmatpush1.bf16.msra.mxu0 %v251
    %1046 = vmatprep.subr.bf16.mxu0 %v256
    %1047 = vmatpush1.bf16.msra.mxu0 %v255
    %1048 = vmatprep.subr.bf16.mxu0 0
    %1049 = vmatpush1.bf16.msra.mxu0 0
    %1050 = vmatprep.subr.bf16.mxu0 0
    %1051 = vmatpush1.bf16.msra.mxu0 0
    %1052 = vmatprep.subr.bf16.mxu0 0
    %1053 = vmatpush1.bf16.msra.mxu0 0
    %1054 = vmatprep.subr.bf16.mxu0 0
    %1055 = vmatpush1.bf16.msra.mxu0 0
    %1056 = vmatprep.subr.bf16.mxu0 0
    %1057 = vmatpush1.bf16.msra.mxu0 0
    %1058 = vmatprep.subr.bf16.mxu0 0
    %1059 = vmatpush1.bf16.msra.mxu0 0
    %1060 = vmatprep.subr.bf16.mxu0 0
    %1061 = vmatpush1.bf16.msra.mxu0 0
    %1062 = vmatprep.subr.bf16.mxu0 0
    %1063 = vmatpush1.bf16.msra.mxu0 0
    %1064 = vmatprep.mubr.bf16.mxu0 0
    %1065 = vmatmul.mubr.bf16.gmra.mrb[0].mxu0 %v990
    %v1066 = vpop.f32.mrb[0].mxu0
    %v1067 = vadd.f32 0.0, %v1066
    %v1068 = vpop.f32.mrb[0].mxu0
    %v1069 = vadd.f32 0.0, %v1068
    %v1070 = vpop.f32.mrb[0].mxu0
    %v1071 = vpop.f32.mrb[0].mxu0
    %1072 = vdwg.mxu0
    %v1073 = vadd.f32 %v986, %v1026
    %v1074 = vadd.f32 %v987, %v1028
    %v1075 = vadd.f32 %v988, %v1067
    %v1076 = vadd.f32 %v989, %v1069
    %v1077 = vtanh.pop %v1073
    %v1078 = vtanh.pop %v1074
    %v1079 = vtanh.pop %v1075
    %v1080 = vtanh.pop %v1076
    %v1081 = vmul.f32 %v1077, 0.5
    %v1082 = vadd.f32 %v1081, 0.5
    %v1083 = vmul.f32 %v1078, 0.5
    %v1084 = vadd.f32 %v1083, 0.5
    %v1085 = vmul.f32 %v1080, 0.5
    %v1086 = vadd.f32 %v1085, 0.5
    %v1087 = vmul.f32 %v1084, %v972
    %v1088 = vmul.f32 %v1082, %v1079
    %v1089 = vadd.f32 %v1087, %v1088
    %v1090 = vtanh.pop %v1089
    %v1091 = vmul.f32 %v1086, %v1090
    %s1092 = scalar_lea.vmem %s0, 56
    %v1093 = vld [vmem:[%s1092] sm:$0xff]
    %1095 = vset.pattern.permute.xlu0 0
    %1096 = vperm.xlu0 %1095, %v1093
    %v1097 = vpop.permute.xlu0 %1096
    %v1099 = vmul.f32 %v1097, %v50
    %v1100 = vmul.f32 %v1097, %v54
    %v1101 = vmul.f32 %v1097, %v58
    %v1102 = vmul.f32 %v1097, %v62
    %v1103 = vadd.f32 %v1099, %v76
    %v1104 = vadd.f32 %v1100, %v80
    %v1105 = vadd.f32 %v1101, %v84
    %v1106 = vadd.f32 %v1102, %v88
    %v1107 = vpack.c.bf16 %v1091, %v1091
    %1108 = vmatprep.subr.bf16.mxu0 %v226
    %1109 = vmatpush1.bf16.msra.mxu0 %v225
    %1110 = vmatprep.subr.bf16.mxu0 %v230
    %1111 = vmatpush1.bf16.msra.mxu0 %v229
    %1112 = vmatprep.subr.bf16.mxu0 %v234
    %1113 = vmatpush1.bf16.msra.mxu0 %v233
    %1114 = vmatprep.subr.bf16.mxu0 %v238
    %1115 = vmatpush1.bf16.msra.mxu0 %v237
    %1116 = vmatprep.subr.bf16.mxu0 %v242
    %1117 = vmatpush1.bf16.msra.mxu0 %v241
    %1118 = vmatprep.subr.bf16.mxu0 %v246
    %1119 = vmatpush1.bf16.msra.mxu0 %v245
    %1120 = vmatprep.subr.bf16.mxu0 %v250
    %1121 = vmatpush1.bf16.msra.mxu0 %v249
    %1122 = vmatprep.subr.bf16.mxu0 %v254
    %1123 = vmatpush1.bf16.msra.mxu0 %v253
    %1124 = vmatprep.subr.bf16.mxu0 0
    %1125 = vmatpush1.bf16.msra.mxu0 0
    %1126 = vmatprep.subr.bf16.mxu0 0
    %1127 = vmatpush1.bf16.msra.mxu0 0
    %1128 = vmatprep.subr.bf16.mxu0 0
    %1129 = vmatpush1.bf16.msra.mxu0 0
    %1130 = vmatprep.subr.bf16.mxu0 0
    %1131 = vmatpush1.bf16.msra.mxu0 0
    %1132 = vmatprep.subr.bf16.mxu0 0
    %1133 = vmatpush1.bf16.msra.mxu0 0
    %1134 = vmatprep.subr.bf16.mxu0 0
    %1135 = vmatpush1.bf16.msra.mxu0 0
    %1136 = vmatprep.subr.bf16.mxu0 0
    %1137 = vmatpush1.bf16.msra.mxu0 0
    %1138 = vmatprep.subr.bf16.mxu0 0
    %1139 = vmatpush1.bf16.msra.mxu0 0
    %1140 = vmatprep.mubr.bf16.mxu0 0
    %1141 = vmatmul.mubr.bf16.gmra.mrb[0].mxu0 %v1107
    %v1142 = vpop.f32.mrb[0].mxu0
    %v1143 = vadd.f32 0.0, %v1142
    %v1144 = vpop.f32.mrb[0].mxu0
    %v1145 = vadd.f32 0.0, %v1144
    %v1146 = vpop.f32.mrb[0].mxu0
    %v1147 = vpop.f32.mrb[0].mxu0
    %1148 = vdwg.mxu0
    %1149 = vmatprep.subr.bf16.mxu0 %v228
    %1150 = vmatpush1.bf16.msra.mxu0 %v227
    %1151 = vmatprep.subr.bf16.mxu0 %v232
    %1152 = vmatpush1.bf16.msra.mxu0 %v231
    %1153 = vmatprep.subr.bf16.mxu0 %v236
    %1154 = vmatpush1.bf16.msra.mxu0 %v235
    %1155 = vmatprep.subr.bf16.mxu0 %v240
    %1156 = vmatpush1.bf16.msra.mxu0 %v239
    %1157 = vmatprep.subr.bf16.mxu0 %v244
    %1158 = vmatpush1.bf16.msra.mxu0 %v243
    %1159 = vmatprep.subr.bf16.mxu0 %v248
    %1160 = vmatpush1.bf16.msra.mxu0 %v247
    %1161 = vmatprep.subr.bf16.mxu0 %v252
    %1162 = vmatpush1.bf16.msra.mxu0 %v251
    %1163 = vmatprep.subr.bf16.mxu0 %v256
    %1164 = vmatpush1.bf16.msra.mxu0 %v255
    %1165 = vmatprep.subr.bf16.mxu0 0
    %1166 = vmatpush1.bf16.msra.mxu0 0
    %1167 = vmatprep.subr.bf16.mxu0 0
    %1168 = vmatpush1.bf16.msra.mxu0 0
    %1169 = vmatprep.subr.bf16.mxu0 0
    %1170 = vmatpush1.bf16.msra.mxu0 0
    %1171 = vmatprep.subr.bf16.mxu0 0
    %1172 = vmatpush1.bf16.msra.mxu0 0
    %1173 = vmatprep.subr.bf16.mxu0 0
    %1174 = vmatpush1.bf16.msra.mxu0 0
    %1175 = vmatprep.subr.bf16.mxu0 0
    %1176 = vmatpush1.bf16.msra.mxu0 0
    %1177 = vmatprep.subr.bf16.mxu0 0
    %1178 = vmatpush1.bf16.msra.mxu0 0
    %1179 = vmatprep.subr.bf16.mxu0 0
    %1180 = vmatpush1.bf16.msra.mxu0 0
    %1181 = vmatprep.mubr.bf16.mxu0 0
    %1182 = vmatmul.mubr.bf16.gmra.mrb[0].mxu0 %v1107
    %v1183 = vpop.f32.mrb[0].mxu0
    %v1184 = vadd.f32 0.0, %v1183
    %v1185 = vpop.f32.mrb[0].mxu0
    %v1186 = vadd.f32 0.0, %v1185
    %v1187 = vpop.f32.mrb[0].mxu0
    %v1188 = vpop.f32.mrb[0].mxu0
    %1189 = vdwg.mxu0
    %v1190 = vadd.f32 %v1103, %v1143
    %v1191 = vadd.f32 %v1104, %v1145
    %v1192 = vadd.f32 %v1105, %v1184
    %v1193 = vadd.f32 %v1106, %v1186
    %v1194 = vtanh.pop %v1190
    %v1195 = vtanh.pop %v1191
    %v1196 = vtanh.pop %v1192
    %v1197 = vtanh.pop %v1193
    %v1198 = vmul.f32 %v1194, 0.5
    %v1199 = vadd.f32 %v1198, 0.5
    %v1200 = vmul.f32 %v1195, 0.5
    %v1201 = vadd.f32 %v1200, 0.5
    %v1202 = vmul.f32 %v1197, 0.5
    %v1203 = vadd.f32 %v1202, 0.5
    %v1204 = vmul.f32 %v1201, %v1089
    %v1205 = vmul.f32 %v1199, %v1196
    %v1206 = vadd.f32 %v1204, %v1205
    %v1207 = vtanh.pop %v1206
    %v1208 = vmul.f32 %v1203, %v1207
    %v1209 = vld [vmem:[%s4] sm:$0x1]
    %v1211 = vlaneseq
    %v1212 = vshrl.u32 %v1211, 7
    %v1213 = vsub.s32 0, %v1212
    %v1214 = vrot.slane %v1209, %v1213
    %v1216 = vmul.f32 %v1208, %v1214
    %1217 = vadd.xlane.f32.xlu0 %v1216
    %v1218 = vpop.xlane.xlu0 %1217
    %v1219 = vld [vmem:[%s5] sm:$0x1]
    %v1221 = vlaneseq
    %v1222 = vshrl.u32 %v1221, 7
    %v1223 = vsub.s32 0, %v1222
    %v1224 = vrot.slane %v1219, %v1223
    %v1226 = vadd.f32 %v1218, %v1224
    %1227 = vst [vmem:[#allocation5] sm:$0xff] %v1226
    // Predicated region
    $region30: #{tpu_custom_call.1} parent=1 // pred_check
      _
    $region31: #{tpu_custom_call.1} parent=1 // pred_check_branch
      %1229 = sbr.rel (0) target = $region33
    $region32: #{tpu_custom_call.1} parent=1 // pred_region
      %s1231 = ssub.s32 128, 128
      %1232 = vsyncadd [#allocation4], %s1231
      %s1234 = sshll.u32 [#allocation5], 4
      %s1235 = int_to_ptr.vmem [resolvable:$true] %s1234
      %1237 = dma.vmem_to_hbm [thread:$0]  %s1235, 128, %s6, [#allocation4]
    $region33: #{tpu_custom_call.1} parent=1 // pred_fallthru
      _
    // Predicated region
    $region34: #{tpu_custom_call.1} parent=1 // pred_check
      _
    $region35: #{tpu_custom_call.1} parent=1 // pred_check_branch
      %1239 = sbr.rel (0) target = $region37
    $region36: #{tpu_custom_call.1} parent=1 // pred_region
      %1240 = dma.done [#allocation4], 128
    $region37: #{tpu_custom_call.1} parent=1 // pred_fallthru
      _
    %1241 = vsyncpa [#allocation3], 1
    %1242 = vsyncpa [#allocation4], 1

</llo_original>
